<compile_context>
chip_gen: v7x
topology: tpu7x:2x2x1
jax: 0.10.0
libtpu: 0.0.40
codegen_flags: <defaults>
</compile_context>

<pallas_src>
import functools
import math

import jax
import jax.numpy as jnp
from jax.experimental import pallas as pl
from jax.experimental.pallas import tpu as pltpu


# --------------------------------- kernel ------------------------------------

def attention_heads_kernel(x_ref, wqkv_ref, bqkv_ref, wo_ref, bo_ref, out_ref,
                           *, batch, seq, heads):
    """Full AttentionHeads forward over the folded (B*T, C) activation slab."""
    B, T, H = batch, seq, heads
    N, C = x_ref.shape                       # N = B*T
    D = C // H
    scale = 1.0 / math.sqrt(D)

    x = x_ref[...]                                                       # (N, C)

    # Fused QKV projection (c_attn): ONE (N, C) @ (C, 3C) MXU matmul + bias.
    qkv = (jnp.dot(x, wqkv_ref[...], preferred_element_type=jnp.float32)
           + bqkv_ref[...])                                              # (N, 3C)

    # Head split -> (H*B, T, D): static lane slices, leading-dim reshapes and a
    # leading-axis stack only (no sublane<->major transposes needed).
    def heads_of(base):
        parts = [qkv[:, base + h * D: base + (h + 1) * D].reshape(B, T, D)
                 for h in range(H)]
        return jnp.stack(parts, axis=0).reshape(H * B, T, D)

    q = heads_of(0)
    k = heads_of(C)
    v = heads_of(2 * C)

    # Scores, batched over all (head, batch) pairs at once.
    s = jnp.einsum('nqd,nkd->nqk', q, k,
                   preferred_element_type=jnp.float32) * scale           # (HB, T, T)

    # The reference "bias" buffer is torch.ones(block_size, block_size), so
    # masked_fill(bias == 0, -inf) never masks anything: FULL non-causal attention.
    # Exact f32 softmax (no approx reciprocal) to stay bit-close to the reference.
    s = s - jnp.max(s, axis=-1, keepdims=True)
    p = jnp.exp(s)
    p = p / jnp.sum(p, axis=-1, keepdims=True)
    # TODO(synk): att_drop is identity (eval mode / p=0).

    y = jnp.einsum('nqk,nkd->nqd', p, v,
                   preferred_element_type=jnp.float32)                   # (HB, T, D)

    # Output projection (out_proj): batched-over-heads einsum + cross-head sum;
    # mathematically identical to concat(heads) @ Wo^T.
    y_h = y.reshape(H, N, D)
    out = jnp.sum(jnp.einsum('hnd,hdc->hnc', y_h, wo_ref[...],
                             preferred_element_type=jnp.float32), axis=0)  # (N, C)
    out_ref[...] = out + bo_ref[...]
    # TODO(synk): resid_dropout is identity (eval mode / p=0).


# ------------------------------ pallas wrapper --------------------------------

def _full_spec(a):
    nd = a.ndim
    return pl.BlockSpec(a.shape, lambda i, _nd=nd: (0,) * _nd)


def attention_heads_forward(x, params, *, num_heads):
    """Equivalent of AttentionHeads.forward(x) for x of shape (B, T, C)."""
    B, T, C = x.shape
    x2 = x.reshape(B * T, C)            # fold batch into the matmul M dimension
    args = (x2, params['wqkv_t'], params['bqkv'], params['wo_h'], params['bo'])
    kernel = functools.partial(attention_heads_kernel,
                               batch=B, seq=T, heads=num_heads)
    out2 = pl.pallas_call(
        kernel,
        out_shape=jax.ShapeDtypeStruct((B * T, C), jnp.float32),
        grid=(1,),
        in_specs=[_full_spec(a) for a in args],
        out_specs=pl.BlockSpec((B * T, C), lambda i: (0, 0)),
        compiler_params=pltpu.CompilerParams(dimension_semantics=("arbitrary",)),
    )(*args)
    return out2.reshape(B, T, C)


# --------------------------- pure-JAX reference --------------------------------

def ref_attention_heads(x, params, *, num_heads):
    B, T, C = x.shape
    H = num_heads
    D = C // H
    qkv = x @ params['wqkv_t'] + params['bqkv']
    q, k, v = jnp.split(qkv, 3, axis=-1)
    sh = lambda t: t.reshape(B, T, H, D).transpose(0, 2, 1, 3)
    q, k, v = sh(q), sh(k), sh(v)
    att = (q @ jnp.swapaxes(k, -1, -2)) * (1.0 / math.sqrt(D))
    att = jax.nn.softmax(att, axis=-1)            # all-ones mask -> no masking
    y = (att @ v).transpose(0, 2, 1, 3).reshape(B, T, C)
    return y @ params['wo_h'].reshape(C, C) + params['bo']


# ------------------------------------ main -------------------------------------

if __name__ == "__main__":
    # config: num_heads=4, emb_size=32, block_size=8, bias=True, dropouts=0 (eval)
    B, T, C, H = 2, 8, 32, 4
    D = C // H

    key = jax.random.PRNGKey(0)
    kx, k0, k1, k2, k3 = jax.random.split(key, 5)
    x = jax.random.normal(kx, (B, T, C), jnp.float32)

    # PyTorch Linear weights are (out_features, in_features); pre-transpose ONCE
    # here to (in, out) so every in-kernel contraction is a plain ((1,),(0,))
    # matmul — one-time layout plumbing, free at runtime.
    w_cattn = 0.05 * jax.random.normal(k0, (3 * C, C), jnp.float32)   # c_attn
    b_cattn = 0.05 * jax.random.normal(k1, (3 * C,), jnp.float32)
    w_oproj = 0.05 * jax.random.normal(k2, (C, C), jnp.float32)       # out_proj
    b_oproj = 0.05 * jax.random.normal(k3, (C,), jnp.float32)

    params = dict(
        wqkv_t=w_cattn.T,                         # (C, 3C)
        bqkv=b_cattn.reshape(1, 3 * C),
        wo_h=w_oproj.T.reshape(H, D, C),          # (in=H*D, out=C) -> (H, D, C)
        bo=b_oproj.reshape(1, C),
    )

    fwd = jax.jit(functools.partial(attention_heads_forward, num_heads=H))
    y = jax.block_until_ready(fwd(x, params))

    assert y.shape == (B, T, C)
    ref = ref_attention_heads(x, params, num_heads=H)
    max_err = float(jnp.max(jnp.abs(y - ref)))
    assert jnp.allclose(y, ref, atol=1e-4, rtol=1e-4), f"max_err={max_err}"
    print("KERNEL_OK")
</pallas_src>

<mosaic_0001>
module attributes {stable_mosaic.version = 11 : i64} {
  func.func @attention_heads_kernel(%arg0: i32, %arg1: memref<16x32xf32, #tpu.memory_space<vmem>>, %arg2: memref<32x96xf32, #tpu.memory_space<vmem>>, %arg3: memref<1x96xf32, #tpu.memory_space<vmem>>, %arg4: memref<4x8x32xf32, #tpu.memory_space<vmem>>, %arg5: memref<1x32xf32, #tpu.memory_space<vmem>>, %arg6: memref<16x32xf32, #tpu.memory_space<vmem>>) attributes {dimension_semantics = [#tpu.dimension_semantics<arbitrary>], iteration_bounds = array<i64: 1>, scalar_prefetch = 0 : i64, scratch_operands = 0 : i64, tpu.core_type = #tpu.core_type<tc>, window_params = [{pipeline_mode = #tpu.pipeline_mode<synchronous>, transform_indices = @transform_0, window_bounds = array<i64: 16, 32>}, {pipeline_mode = #tpu.pipeline_mode<synchronous>, transform_indices = @transform_1, window_bounds = array<i64: 32, 96>}, {pipeline_mode = #tpu.pipeline_mode<synchronous>, transform_indices = @transform_2, window_bounds = array<i64: 1, 96>}, {pipeline_mode = #tpu.pipeline_mode<synchronous>, transform_indices = @transform_3, window_bounds = array<i64: 4, 8, 32>}, {pipeline_mode = #tpu.pipeline_mode<synchronous>, transform_indices = @transform_4, window_bounds = array<i64: 1, 32>}, {pipeline_mode = #tpu.pipeline_mode<synchronous>, transform_indices = @transform_5, window_bounds = array<i64: 16, 32>}]} {
    %c0 = arith.constant 0 : index
    %c0_0 = arith.constant 0 : index
    %0 = vector.load %arg1[%c0, %c0_0] : memref<16x32xf32, #tpu.memory_space<vmem>>, vector<16x32xf32>
    %c0_1 = arith.constant 0 : index
    %c0_2 = arith.constant 0 : index
    %1 = vector.load %arg2[%c0_1, %c0_2] : memref<32x96xf32, #tpu.memory_space<vmem>>, vector<32x96xf32>
    %cst = arith.constant dense<0.000000e+00> : vector<16x96xf32>
    %2 = tpu.matmul %0, %1, %cst {dimension_numbers = #tpu.dot_dimension_numbers<[1], [0], [0], [1], [0, 0, 1, 1], [], []>} : vector<16x32xf32>, vector<32x96xf32>, vector<16x96xf32> -> vector<16x96xf32>
    %c0_3 = arith.constant 0 : index
    %c0_4 = arith.constant 0 : index
    %3 = vector.load %arg3[%c0_3, %c0_4] : memref<1x96xf32, #tpu.memory_space<vmem>>, vector<1x96xf32>
    %4 = vector.broadcast %3 : vector<1x96xf32> to vector<16x96xf32>
    %5 = arith.addf %2, %4 : vector<16x96xf32>
    %6 = vector.extract_strided_slice %5 {offsets = [0, 0], sizes = [16, 8], strides = [1, 1]} : vector<16x96xf32> to vector<16x8xf32>
    %7 = vector.shape_cast %6 : vector<16x8xf32> to vector<2x8x8xf32>
    %8 = vector.extract_strided_slice %5 {offsets = [0, 8], sizes = [16, 8], strides = [1, 1]} : vector<16x96xf32> to vector<16x8xf32>
    %9 = vector.shape_cast %8 : vector<16x8xf32> to vector<2x8x8xf32>
    %10 = vector.extract_strided_slice %5 {offsets = [0, 16], sizes = [16, 8], strides = [1, 1]} : vector<16x96xf32> to vector<16x8xf32>
    %11 = vector.shape_cast %10 : vector<16x8xf32> to vector<2x8x8xf32>
    %12 = vector.extract_strided_slice %5 {offsets = [0, 24], sizes = [16, 8], strides = [1, 1]} : vector<16x96xf32> to vector<16x8xf32>
    %13 = vector.shape_cast %12 : vector<16x8xf32> to vector<2x8x8xf32>
    %14 = vector.shape_cast %7 : vector<2x8x8xf32> to vector<1x2x8x8xf32>
    %15 = vector.shape_cast %9 : vector<2x8x8xf32> to vector<1x2x8x8xf32>
    %16 = vector.shape_cast %11 : vector<2x8x8xf32> to vector<1x2x8x8xf32>
    %17 = vector.shape_cast %13 : vector<2x8x8xf32> to vector<1x2x8x8xf32>
    %18 = tpu.concatenate %14, %15, %16, %17 in 0 : vector<1x2x8x8xf32>, vector<1x2x8x8xf32>, vector<1x2x8x8xf32>, vector<1x2x8x8xf32> -> vector<4x2x8x8xf32>
    %19 = vector.shape_cast %18 : vector<4x2x8x8xf32> to vector<8x8x8xf32>
    %20 = vector.extract_strided_slice %5 {offsets = [0, 32], sizes = [16, 8], strides = [1, 1]} : vector<16x96xf32> to vector<16x8xf32>
    %21 = vector.shape_cast %20 : vector<16x8xf32> to vector<2x8x8xf32>
    %22 = vector.extract_strided_slice %5 {offsets = [0, 40], sizes = [16, 8], strides = [1, 1]} : vector<16x96xf32> to vector<16x8xf32>
    %23 = vector.shape_cast %22 : vector<16x8xf32> to vector<2x8x8xf32>
    %24 = vector.extract_strided_slice %5 {offsets = [0, 48], sizes = [16, 8], strides = [1, 1]} : vector<16x96xf32> to vector<16x8xf32>
    %25 = vector.shape_cast %24 : vector<16x8xf32> to vector<2x8x8xf32>
    %26 = vector.extract_strided_slice %5 {offsets = [0, 56], sizes = [16, 8], strides = [1, 1]} : vector<16x96xf32> to vector<16x8xf32>
    %27 = vector.shape_cast %26 : vector<16x8xf32> to vector<2x8x8xf32>
    %28 = vector.shape_cast %21 : vector<2x8x8xf32> to vector<1x2x8x8xf32>
    %29 = vector.shape_cast %23 : vector<2x8x8xf32> to vector<1x2x8x8xf32>
    %30 = vector.shape_cast %25 : vector<2x8x8xf32> to vector<1x2x8x8xf32>
    %31 = vector.shape_cast %27 : vector<2x8x8xf32> to vector<1x2x8x8xf32>
    %32 = tpu.concatenate %28, %29, %30, %31 in 0 : vector<1x2x8x8xf32>, vector<1x2x8x8xf32>, vector<1x2x8x8xf32>, vector<1x2x8x8xf32> -> vector<4x2x8x8xf32>
    %33 = vector.shape_cast %32 : vector<4x2x8x8xf32> to vector<8x8x8xf32>
    %34 = vector.extract_strided_slice %5 {offsets = [0, 64], sizes = [16, 8], strides = [1, 1]} : vector<16x96xf32> to vector<16x8xf32>
    %35 = vector.shape_cast %34 : vector<16x8xf32> to vector<2x8x8xf32>
    %36 = vector.extract_strided_slice %5 {offsets = [0, 72], sizes = [16, 8], strides = [1, 1]} : vector<16x96xf32> to vector<16x8xf32>
    %37 = vector.shape_cast %36 : vector<16x8xf32> to vector<2x8x8xf32>
    %38 = vector.extract_strided_slice %5 {offsets = [0, 80], sizes = [16, 8], strides = [1, 1]} : vector<16x96xf32> to vector<16x8xf32>
    %39 = vector.shape_cast %38 : vector<16x8xf32> to vector<2x8x8xf32>
    %40 = vector.extract_strided_slice %5 {offsets = [0, 88], sizes = [16, 8], strides = [1, 1]} : vector<16x96xf32> to vector<16x8xf32>
    %41 = vector.shape_cast %40 : vector<16x8xf32> to vector<2x8x8xf32>
    %42 = vector.shape_cast %35 : vector<2x8x8xf32> to vector<1x2x8x8xf32>
    %43 = vector.shape_cast %37 : vector<2x8x8xf32> to vector<1x2x8x8xf32>
    %44 = vector.shape_cast %39 : vector<2x8x8xf32> to vector<1x2x8x8xf32>
    %45 = vector.shape_cast %41 : vector<2x8x8xf32> to vector<1x2x8x8xf32>
    %46 = tpu.concatenate %42, %43, %44, %45 in 0 : vector<1x2x8x8xf32>, vector<1x2x8x8xf32>, vector<1x2x8x8xf32>, vector<1x2x8x8xf32> -> vector<4x2x8x8xf32>
    %47 = vector.shape_cast %46 : vector<4x2x8x8xf32> to vector<8x8x8xf32>
    "tpu.trace_start"() <{level = 10 : i32, message = "nqd,nkd->nqk"}> : () -> ()
    %cst_5 = arith.constant dense<0.000000e+00> : vector<8x8x8xf32>
    %48 = tpu.matmul %19, %33, %cst_5 {dimension_numbers = #tpu.dot_dimension_numbers<[2], [2], [1], [1], [0, 0, 0, 1, 1, 1], [0], [0]>} : vector<8x8x8xf32>, vector<8x8x8xf32>, vector<8x8x8xf32> -> vector<8x8x8xf32>
    "tpu.trace_stop"() : () -> ()
    %cst_6 = arith.constant 0.353553385 : f32
    %49 = vector.broadcast %cst_6 : f32 to vector<8x8x8xf32>
    %50 = arith.mulf %48, %49 : vector<8x8x8xf32>
    %cst_7 = arith.constant dense<0xFF800000> : vector<8x8xf32>
    %51 = vector.multi_reduction <maximumf>, %50, %cst_7 [2] : vector<8x8x8xf32> to vector<8x8xf32>
    %52 = vector.shape_cast %51 : vector<8x8xf32> to vector<8x8x1xf32>
    %53 = vector.broadcast %52 : vector<8x8x1xf32> to vector<8x8x8xf32>
    %54 = arith.subf %50, %53 : vector<8x8x8xf32>
    %55 = math.exp %54 : vector<8x8x8xf32>
    %cst_8 = arith.constant dense<0.000000e+00> : vector<8x8xf32>
    %56 = vector.multi_reduction <add>, %55, %cst_8 [2] : vector<8x8x8xf32> to vector<8x8xf32>
    %57 = vector.shape_cast %56 : vector<8x8xf32> to vector<8x8x1xf32>
    %58 = vector.broadcast %57 : vector<8x8x1xf32> to vector<8x8x8xf32>
    %59 = arith.divf %55, %58 : vector<8x8x8xf32>
    "tpu.trace_start"() <{level = 10 : i32, message = "nqk,nkd->nqd"}> : () -> ()
    %cst_9 = arith.constant dense<0.000000e+00> : vector<8x8x8xf32>
    %60 = tpu.matmul %59, %47, %cst_9 {dimension_numbers = #tpu.dot_dimension_numbers<[2], [1], [1], [2], [0, 0, 0, 1, 1, 2], [0], [0]>} : vector<8x8x8xf32>, vector<8x8x8xf32>, vector<8x8x8xf32> -> vector<8x8x8xf32>
    "tpu.trace_stop"() : () -> ()
    %61 = vector.shape_cast %60 : vector<8x8x8xf32> to vector<4x16x8xf32>
    %c0_10 = arith.constant 0 : index
    %c0_11 = arith.constant 0 : index
    %c0_12 = arith.constant 0 : index
    %62 = vector.load %arg4[%c0_10, %c0_11, %c0_12] : memref<4x8x32xf32, #tpu.memory_space<vmem>>, vector<4x8x32xf32>
    "tpu.trace_start"() <{level = 10 : i32, message = "hnd,hdc->hnc"}> : () -> ()
    %cst_13 = arith.constant dense<0.000000e+00> : vector<4x16x32xf32>
    %63 = tpu.matmul %61, %62, %cst_13 {dimension_numbers = #tpu.dot_dimension_numbers<[2], [1], [1], [2], [0, 0, 0, 1, 1, 2], [0], [0]>} : vector<4x16x8xf32>, vector<4x8x32xf32>, vector<4x16x32xf32> -> vector<4x16x32xf32>
    "tpu.trace_stop"() : () -> ()
    %cst_14 = arith.constant dense<0.000000e+00> : vector<16x32xf32>
    %64 = vector.multi_reduction <add>, %63, %cst_14 [0] : vector<4x16x32xf32> to vector<16x32xf32>
    %c0_15 = arith.constant 0 : index
    %c0_16 = arith.constant 0 : index
    %65 = vector.load %arg5[%c0_15, %c0_16] : memref<1x32xf32, #tpu.memory_space<vmem>>, vector<1x32xf32>
    %66 = vector.broadcast %65 : vector<1x32xf32> to vector<16x32xf32>
    %67 = arith.addf %64, %66 : vector<16x32xf32>
    %c0_17 = arith.constant 0 : index
    %c0_18 = arith.constant 0 : index
    %68 = vector.load %arg6[%c0_17, %c0_18] : memref<16x32xf32, #tpu.memory_space<vmem>>, vector<16x32xf32>
    tpu.vector_store %arg6[%c0_17, %c0_18], %67 {strides = array<i32>} : memref<16x32xf32, #tpu.memory_space<vmem>>, vector<16x32xf32>,
    return
  }
  func.func @transform_0(%arg0: i32) -> (i32, i32) {
    %c0_i32 = arith.constant 0 : i32
    %c0_i32_0 = arith.constant 0 : i32
    %c0_i32_1 = arith.constant 0 : i32
    return %c0_i32, %c0_i32_0 : i32, i32
  }
  func.func @transform_1(%arg0: i32) -> (i32, i32) {
    %c0_i32 = arith.constant 0 : i32
    %c0_i32_0 = arith.constant 0 : i32
    %c0_i32_1 = arith.constant 0 : i32
    return %c0_i32, %c0_i32_0 : i32, i32
  }
  func.func @transform_2(%arg0: i32) -> (i32, i32) {
    %c0_i32 = arith.constant 0 : i32
    %c0_i32_0 = arith.constant 0 : i32
    %c0_i32_1 = arith.constant 0 : i32
    return %c0_i32, %c0_i32_0 : i32, i32
  }
  func.func @transform_3(%arg0: i32) -> (i32, i32, i32) {
    %c0_i32 = arith.constant 0 : i32
    %c0_i32_0 = arith.constant 0 : i32
    %c0_i32_1 = arith.constant 0 : i32
    %c0_i32_2 = arith.constant 0 : i32
    return %c0_i32, %c0_i32_0, %c0_i32_1 : i32, i32, i32
  }
  func.func @transform_4(%arg0: i32) -> (i32, i32) {
    %c0_i32 = arith.constant 0 : i32
    %c0_i32_0 = arith.constant 0 : i32
    %c0_i32_1 = arith.constant 0 : i32
    return %c0_i32, %c0_i32_0 : i32, i32
  }
  func.func @transform_5(%arg0: i32) -> (i32, i32) {
    %c0_i32 = arith.constant 0 : i32
    %c0_i32_0 = arith.constant 0 : i32
    %c0_i32_1 = arith.constant 0 : i32
    return %c0_i32, %c0_i32_0 : i32, i32
  }
}

</mosaic_0001>

<llo_original>
// kernel: attention_heads_forward.1
$region0: #{attention_heads_forward.1}
  #allocation0 [shape = 'u32[]', space=smem, size = 0x4, offset = 0x4, fixed_abs, tag = 'smem constant byte address 0x4 - core index']
  #allocation1 [shape = 'u32[144,128]{1,0:T(1,128)}', space=vmem, size = 0x12000, scoped, tag = 'internal scratch']
  %s0 = inlined_call_operand.hbm [shape: f32[16,32], index: 0, kind: input, shape index: {}]
  %s1 = inlined_call_operand.hbm [shape: f32[32,96], index: 1, kind: input, shape index: {}]
  %s2 = inlined_call_operand.vmem [shape: f32[1,96], index: 2, kind: input, shape index: {}]
  %s3 = inlined_call_operand.hbm [shape: f32[4,8,32], index: 3, kind: input, shape index: {}]
  %s4 = inlined_call_operand.vmem [shape: f32[1,32], index: 4, kind: input, shape index: {}]
  %s5 = inlined_call_operand.hbm [shape: f32[16,32], index: 5, kind: output, shape index: {}]
  %s6 = sld [smem:[#allocation0]]
  $region42: #{attention_heads_forward.1} parent=0
    _
  %s8 = ssub.s32 1, %s6
  %s9 = scalar_select 0, %s8, %s6
  $region1: #{attention_heads_forward.1} parent=0
    #allocation2 [shape = 'u8[8192]{0}', space=vmem, size = 0x2000, scoped, tag = 'input window, operand 0, single buffered']
    #allocation3 [shape = 's32[1]{0}', space=sflag, size = 0x4, scoped, tag = 'scoped memory for attention_heads_forward.1']
    #allocation4 [shape = 's32[1]{0}', space=sflag, size = 0x4, scoped, tag = 'scoped memory for attention_heads_forward.1']
    #allocation5 [shape = 'u8[16384]{0}', space=vmem, size = 0x4000, scoped, tag = 'input window, operand 1, single buffered']
    #allocation6 [shape = 's32[1]{0}', space=sflag, size = 0x4, scoped, tag = 'scoped memory for attention_heads_forward.1']
    #allocation7 [shape = 'u8[16384]{0}', space=vmem, size = 0x4000, scoped, tag = 'input window, operand 3, single buffered']
    #allocation8 [shape = 'u8[8192]{0}', space=vmem, size = 0x2000, scoped, tag = 'output window, operand 0, single buffered']
    %10 = vsyncpa [#allocation3], 0
    %11 = vsyncpa [#allocation6], 0
    %12 = vsyncpa [#allocation4], 0
    // Predicated region
    $region2: #{attention_heads_forward.1} parent=1 // pred_check
      _
    $region3: #{attention_heads_forward.1} parent=1 // pred_check_branch
      %14 = sbr.rel (0) target = $region5
    $region4: #{attention_heads_forward.1} parent=1 // pred_region
      %s16 = ssub.s32 256, 256
      %17 = vsyncadd [#allocation3], %s16
      %s18 = sshll.u32 [#allocation2], 4
      %s19 = int_to_ptr.vmem [resolvable:$true] %s18
      %24 = dma.hbm_to_vmem [thread:$0]  %s0, 256, %s19, [#allocation3], 128, 128, 8
    $region5: #{attention_heads_forward.1} parent=1 // pred_fallthru
      _
    // Predicated region
    $region6: #{attention_heads_forward.1} parent=1 // pred_check
      _
    $region7: #{attention_heads_forward.1} parent=1 // pred_check_branch
      %26 = sbr.rel (0) target = $region9
    $region8: #{attention_heads_forward.1} parent=1 // pred_region
      %s28 = ssub.s32 512, 512
      %29 = vsyncadd [#allocation6], %s28
      %s30 = sshll.u32 [#allocation5], 4
      %s31 = int_to_ptr.vmem [resolvable:$true] %s30
      %36 = dma.hbm_to_vmem [thread:$0]  %s1, 512, %s31, [#allocation6], 128, 128, 8
    $region9: #{attention_heads_forward.1} parent=1 // pred_fallthru
      _
    // Predicated region
    $region10: #{attention_heads_forward.1} parent=1 // pred_check
      _
    $region11: #{attention_heads_forward.1} parent=1 // pred_check_branch
      %38 = sbr.rel (0) target = $region13
    $region12: #{attention_heads_forward.1} parent=1 // pred_region
      _
    $region13: #{attention_heads_forward.1} parent=1 // pred_fallthru
      _
    // Predicated region
    $region14: #{attention_heads_forward.1} parent=1 // pred_check
      _
    $region15: #{attention_heads_forward.1} parent=1 // pred_check_branch
      %40 = sbr.rel (0) target = $region17
    $region16: #{attention_heads_forward.1} parent=1 // pred_region
      %s42 = ssub.s32 512, 512
      %43 = vsyncadd [#allocation6], %s42
      %s44 = sshll.u32 [#allocation7], 4
      %s45 = int_to_ptr.vmem [resolvable:$true] %s44
      %50 = dma.hbm_to_vmem [thread:$0]  %s3, 512, %s45, [#allocation6], 128, 128, 8
    $region17: #{attention_heads_forward.1} parent=1 // pred_fallthru
      _
    // Predicated region
    $region18: #{attention_heads_forward.1} parent=1 // pred_check
      _
    $region19: #{attention_heads_forward.1} parent=1 // pred_check_branch
      %52 = sbr.rel (0) target = $region21
    $region20: #{attention_heads_forward.1} parent=1 // pred_region
      _
    $region21: #{attention_heads_forward.1} parent=1 // pred_fallthru
      _
    // Predicated region
    $region22: #{attention_heads_forward.1} parent=1 // pred_check
      _
    $region23: #{attention_heads_forward.1} parent=1 // pred_check_branch
      %54 = sbr.rel (0) target = $region25
    $region24: #{attention_heads_forward.1} parent=1 // pred_region
      %55 = dma.done [#allocation3], 256
    $region25: #{attention_heads_forward.1} parent=1 // pred_fallthru
      _
    // Predicated region
    $region26: #{attention_heads_forward.1} parent=1 // pred_check
      _
    $region27: #{attention_heads_forward.1} parent=1 // pred_check_branch
      %57 = sbr.rel (0) target = $region29
    $region28: #{attention_heads_forward.1} parent=1 // pred_region
      %58 = dma.done [#allocation6], 512
    $region29: #{attention_heads_forward.1} parent=1 // pred_fallthru
      _
    // Predicated region
    $region30: #{attention_heads_forward.1} parent=1 // pred_check
      _
    $region31: #{attention_heads_forward.1} parent=1 // pred_check_branch
      %60 = sbr.rel (0) target = $region33
    $region32: #{attention_heads_forward.1} parent=1 // pred_region
      %61 = dma.done [#allocation6], 512
    $region33: #{attention_heads_forward.1} parent=1 // pred_fallthru
      _
    %v62 = vld [vmem:[#allocation2] sm:$0xff]
    %v63 = vld [vmem:[#allocation2 + $0x8] sm:$0xff]
    %v64 = vld [vmem:[#allocation5] sm:$0xff]
    %v65 = vld [vmem:[#allocation5 + $0x8] sm:$0xff]
    %v66 = vld [vmem:[#allocation5 + $0x10] sm:$0xff]
    %v67 = vld [vmem:[#allocation5 + $0x18] sm:$0xff]
    %v68 = vld [vmem:[%s2] sm:$0x1]
    %v70 = vlaneseq
    %v71 = vshrl.u32 %v70, 7
    %v72 = vsub.s32 0, %v71
    %v73 = vrot.slane %v68, %v72
    %vm75 = vcmask 261120
    %v77 = vsel %vm75, %v62, 0
    %v80 = vsel %vm75, %v63, 0
    %82 = vmatprep.subr.mxu0 0.0
    %83 = vmatpush1.msra.mxu0 %v64
    %84 = vmatprep.subr.mxu0 0.0
    %85 = vmatpush1.msra.mxu0 %v65
    %86 = vmatprep.subr.mxu0 0.0
    %87 = vmatpush1.msra.mxu0 %v66
    %88 = vmatprep.subr.mxu0 0.0
    %89 = vmatpush1.msra.mxu0 %v67
    %90 = vmatprep.subr.mxu0 0.0
    %91 = vmatpush1.msra.mxu0 0.0
    %92 = vmatprep.subr.mxu0 0.0
    %93 = vmatpush1.msra.mxu0 0.0
    %94 = vmatprep.subr.mxu0 0.0
    %95 = vmatpush1.msra.mxu0 0.0
    %96 = vmatprep.subr.mxu0 0.0
    %97 = vmatpush1.msra.mxu0 0.0
    %98 = vmatprep.subr.mxu0 0.0
    %99 = vmatpush1.msra.mxu0 0.0
    %100 = vmatprep.subr.mxu0 0.0
    %101 = vmatpush1.msra.mxu0 0.0
    %102 = vmatprep.subr.mxu0 0.0
    %103 = vmatpush1.msra.mxu0 0.0
    %104 = vmatprep.subr.mxu0 0.0
    %105 = vmatpush1.msra.mxu0 0.0
    %106 = vmatprep.subr.mxu0 0.0
    %107 = vmatpush1.msra.mxu0 0.0
    %108 = vmatprep.subr.mxu0 0.0
    %109 = vmatpush1.msra.mxu0 0.0
    %110 = vmatprep.subr.mxu0 0.0
    %111 = vmatpush1.msra.mxu0 0.0
    %112 = vmatprep.subr.mxu0 0.0
    %113 = vmatpush1.msra.mxu0 0.0
    %114 = vmatprep.subr.mxu0 0.0
    %115 = vmatpush1.msra.mxu0 0.0
    %116 = vmatprep.subr.mxu0 0.0
    %117 = vmatpush1.msra.mxu0 0.0
    %118 = vmatprep.subr.mxu0 0.0
    %119 = vmatpush1.msra.mxu0 0.0
    %120 = vmatprep.subr.mxu0 0.0
    %121 = vmatpush1.msra.mxu0 0.0
    %122 = vmatprep.subr.mxu0 0.0
    %123 = vmatpush1.msra.mxu0 0.0
    %124 = vmatprep.subr.mxu0 0.0
    %125 = vmatpush1.msra.mxu0 0.0
    %126 = vmatprep.subr.mxu0 0.0
    %127 = vmatpush1.msra.mxu0 0.0
    %128 = vmatprep.subr.mxu0 0.0
    %129 = vmatpush1.msra.mxu0 0.0
    %130 = vmatprep.subr.mxu0 0.0
    %131 = vmatpush1.msra.mxu0 0.0
    %132 = vmatprep.subr.mxu0 0.0
    %133 = vmatpush1.msra.mxu0 0.0
    %134 = vmatprep.subr.mxu0 0.0
    %135 = vmatpush1.msra.mxu0 0.0
    %136 = vmatprep.subr.mxu0 0.0
    %137 = vmatpush1.msra.mxu0 0.0
    %138 = vmatprep.subr.mxu0 0.0
    %139 = vmatpush1.msra.mxu0 0.0
    %140 = vmatprep.subr.mxu0 0.0
    %141 = vmatpush1.msra.mxu0 0.0
    %142 = vmatprep.subr.mxu0 0.0
    %143 = vmatpush1.msra.mxu0 0.0
    %144 = vmatprep.subr.mxu0 0.0
    %145 = vmatpush1.msra.mxu0 0.0
    %146 = vmatprep.mubr.f32.mxu0 0.0
    %147 = vmatmul.mubr.f32.gmra.mrb[0].mxu0 %v77
    %v148 = vpop.f32.mrb[0].mxu0
    %v149 = vadd.f32 %v73, %v148
    %v150 = vpop.f32.mrb[0].mxu0
    %151 = vmatprep.mubr.f32.mxu0 0.0
    %152 = vmatmul.mubr.f32.gmra.mrb[0].mxu0 %v80
    %v153 = vpop.f32.mrb[0].mxu0
    %v154 = vadd.f32 %v73, %v153
    %v155 = vpop.f32.mrb[0].mxu0
    %156 = vdwg.mxu0
    %159 = vrot.lane.b32.xlu0 %v149, 120
    %v160 = vpop.permute.xlu0 %159
    %161 = vrot.lane.b32.xlu0 %v154, 120
    %v162 = vpop.permute.xlu0 %161
    %163 = vrot.lane.b32.xlu0 %v149, 112
    %v164 = vpop.permute.xlu0 %163
    %165 = vrot.lane.b32.xlu0 %v154, 112
    %v166 = vpop.permute.xlu0 %165
    %167 = vrot.lane.b32.xlu0 %v149, 104
    %v168 = vpop.permute.xlu0 %167
    %169 = vrot.lane.b32.xlu0 %v154, 104
    %v170 = vpop.permute.xlu0 %169
    %171 = vrot.lane.b32.xlu0 %v149, 96
    %v172 = vpop.permute.xlu0 %171
    %vm173 = vcmask 64512
    %v174 = vsel %vm173, %v149, 0
    %v176 = vsel %vm173, %v172, 0
    %178 = vmatprep.subr.mxu0 0.0
    %179 = vmatpush1.xpose.msra.mxu0 %v176
    %180 = vmatprep.subr.mxu0 0.0
    %181 = vmatpush1.xpose.msra.mxu0 0.0
    %182 = vmatprep.subr.mxu0 0.0
    %183 = vmatpush1.xpose.msra.mxu0 0.0
    %184 = vmatprep.subr.mxu0 0.0
    %185 = vmatpush1.xpose.msra.mxu0 0.0
    %186 = vmatprep.subr.mxu0 0.0
    %187 = vmatpush1.xpose.msra.mxu0 0.0
    %188 = vmatprep.subr.mxu0 0.0
    %189 = vmatpush1.xpose.msra.mxu0 0.0
    %190 = vmatprep.subr.mxu0 0.0
    %191 = vmatpush1.xpose.msra.mxu0 0.0
    %192 = vmatprep.subr.mxu0 0.0
    %193 = vmatpush1.xpose.msra.mxu0 0.0
    %194 = vmatprep.subr.mxu0 0.0
    %195 = vmatpush1.xpose.msra.mxu0 0.0
    %196 = vmatprep.subr.mxu0 0.0
    %197 = vmatpush1.xpose.msra.mxu0 0.0
    %198 = vmatprep.subr.mxu0 0.0
    %199 = vmatpush1.xpose.msra.mxu0 0.0
    %200 = vmatprep.subr.mxu0 0.0
    %201 = vmatpush1.xpose.msra.mxu0 0.0
    %202 = vmatprep.subr.mxu0 0.0
    %203 = vmatpush1.xpose.msra.mxu0 0.0
    %204 = vmatprep.subr.mxu0 0.0
    %205 = vmatpush1.xpose.msra.mxu0 0.0
    %206 = vmatprep.subr.mxu0 0.0
    %207 = vmatpush1.xpose.msra.mxu0 0.0
    %208 = vmatprep.subr.mxu0 0.0
    %209 = vmatpush1.xpose.msra.mxu0 0.0
    %210 = vmatprep.subr.mxu0 0.0
    %211 = vmatpush1.xpose.msra.mxu0 0.0
    %212 = vmatprep.subr.mxu0 0.0
    %213 = vmatpush1.xpose.msra.mxu0 0.0
    %214 = vmatprep.subr.mxu0 0.0
    %215 = vmatpush1.xpose.msra.mxu0 0.0
    %216 = vmatprep.subr.mxu0 0.0
    %217 = vmatpush1.xpose.msra.mxu0 0.0
    %218 = vmatprep.subr.mxu0 0.0
    %219 = vmatpush1.xpose.msra.mxu0 0.0
    %220 = vmatprep.subr.mxu0 0.0
    %221 = vmatpush1.xpose.msra.mxu0 0.0
    %222 = vmatprep.subr.mxu0 0.0
    %223 = vmatpush1.xpose.msra.mxu0 0.0
    %224 = vmatprep.subr.mxu0 0.0
    %225 = vmatpush1.xpose.msra.mxu0 0.0
    %226 = vmatprep.subr.mxu0 0.0
    %227 = vmatpush1.xpose.msra.mxu0 0.0
    %228 = vmatprep.subr.mxu0 0.0
    %229 = vmatpush1.xpose.msra.mxu0 0.0
    %230 = vmatprep.subr.mxu0 0.0
    %231 = vmatpush1.xpose.msra.mxu0 0.0
    %232 = vmatprep.subr.mxu0 0.0
    %233 = vmatpush1.xpose.msra.mxu0 0.0
    %234 = vmatprep.subr.mxu0 0.0
    %235 = vmatpush1.xpose.msra.mxu0 0.0
    %236 = vmatprep.subr.mxu0 0.0
    %237 = vmatpush1.xpose.msra.mxu0 0.0
    %238 = vmatprep.subr.mxu0 0.0
    %239 = vmatpush1.xpose.msra.mxu0 0.0
    %240 = vmatprep.subr.mxu0 0.0
    %241 = vmatpush1.xpose.msra.mxu0 0.0
    %242 = vmatprep.mubr.f32.mxu0 0.0
    %243 = vmatmul.mubr.f32.gmra.mrb[0].mxu0 %v174
    %v244 = vpop.f32.mrb[0].mxu0
    %v245 = vadd.f32 0.0, %v244
    %v246 = vpop.f32.mrb[0].mxu0
    %247 = vdwg.mxu0
    %248 = vrot.lane.b32.xlu0 %v154, 96
    %v249 = vpop.permute.xlu0 %248
    %v250 = vsel %vm173, %v154, 0
    %v252 = vsel %vm173, %v249, 0
    %254 = vmatprep.subr.mxu0 0.0
    %255 = vmatpush1.xpose.msra.mxu0 %v252
    %256 = vmatprep.subr.mxu0 0.0
    %257 = vmatpush1.xpose.msra.mxu0 0.0
    %258 = vmatprep.subr.mxu0 0.0
    %259 = vmatpush1.xpose.msra.mxu0 0.0
    %260 = vmatprep.subr.mxu0 0.0
    %261 = vmatpush1.xpose.msra.mxu0 0.0
    %262 = vmatprep.subr.mxu0 0.0
    %263 = vmatpush1.xpose.msra.mxu0 0.0
    %264 = vmatprep.subr.mxu0 0.0
    %265 = vmatpush1.xpose.msra.mxu0 0.0
    %266 = vmatprep.subr.mxu0 0.0
    %267 = vmatpush1.xpose.msra.mxu0 0.0
    %268 = vmatprep.subr.mxu0 0.0
    %269 = vmatpush1.xpose.msra.mxu0 0.0
    %270 = vmatprep.subr.mxu0 0.0
    %271 = vmatpush1.xpose.msra.mxu0 0.0
    %272 = vmatprep.subr.mxu0 0.0
    %273 = vmatpush1.xpose.msra.mxu0 0.0
    %274 = vmatprep.subr.mxu0 0.0
    %275 = vmatpush1.xpose.msra.mxu0 0.0
    %276 = vmatprep.subr.mxu0 0.0
    %277 = vmatpush1.xpose.msra.mxu0 0.0
    %278 = vmatprep.subr.mxu0 0.0
    %279 = vmatpush1.xpose.msra.mxu0 0.0
    %280 = vmatprep.subr.mxu0 0.0
    %281 = vmatpush1.xpose.msra.mxu0 0.0
    %282 = vmatprep.subr.mxu0 0.0
    %283 = vmatpush1.xpose.msra.mxu0 0.0
    %284 = vmatprep.subr.mxu0 0.0
    %285 = vmatpush1.xpose.msra.mxu0 0.0
    %286 = vmatprep.subr.mxu0 0.0
    %287 = vmatpush1.xpose.msra.mxu0 0.0
    %288 = vmatprep.subr.mxu0 0.0
    %289 = vmatpush1.xpose.msra.mxu0 0.0
    %290 = vmatprep.subr.mxu0 0.0
    %291 = vmatpush1.xpose.msra.mxu0 0.0
    %292 = vmatprep.subr.mxu0 0.0
    %293 = vmatpush1.xpose.msra.mxu0 0.0
    %294 = vmatprep.subr.mxu0 0.0
    %295 = vmatpush1.xpose.msra.mxu0 0.0
    %296 = vmatprep.subr.mxu0 0.0
    %297 = vmatpush1.xpose.msra.mxu0 0.0
    %298 = vmatprep.subr.mxu0 0.0
    %299 = vmatpush1.xpose.msra.mxu0 0.0
    %300 = vmatprep.subr.mxu0 0.0
    %301 = vmatpush1.xpose.msra.mxu0 0.0
    %302 = vmatprep.subr.mxu0 0.0
    %303 = vmatpush1.xpose.msra.mxu0 0.0
    %304 = vmatprep.subr.mxu0 0.0
    %305 = vmatpush1.xpose.msra.mxu0 0.0
    %306 = vmatprep.subr.mxu0 0.0
    %307 = vmatpush1.xpose.msra.mxu0 0.0
    %308 = vmatprep.subr.mxu0 0.0
    %309 = vmatpush1.xpose.msra.mxu0 0.0
    %310 = vmatprep.subr.mxu0 0.0
    %311 = vmatpush1.xpose.msra.mxu0 0.0
    %312 = vmatprep.subr.mxu0 0.0
    %313 = vmatpush1.xpose.msra.mxu0 0.0
    %314 = vmatprep.subr.mxu0 0.0
    %315 = vmatpush1.xpose.msra.mxu0 0.0
    %316 = vmatprep.subr.mxu0 0.0
    %317 = vmatpush1.xpose.msra.mxu0 0.0
    %318 = vmatprep.mubr.f32.mxu0 0.0
    %319 = vmatmul.mubr.f32.gmra.mrb[0].mxu0 %v250
    %v320 = vpop.f32.mrb[0].mxu0
    %v321 = vadd.f32 0.0, %v320
    %v322 = vpop.f32.mrb[0].mxu0
    %323 = vdwg.mxu0
    %324 = vrot.lane.b32.xlu0 %v160, 96
    %v325 = vpop.permute.xlu0 %324
    %v326 = vsel %vm173, %v160, 0
    %v328 = vsel %vm173, %v325, 0
    %330 = vmatprep.subr.mxu0 0.0
    %331 = vmatpush1.xpose.msra.mxu0 %v328
    %332 = vmatprep.subr.mxu0 0.0
    %333 = vmatpush1.xpose.msra.mxu0 0.0
    %334 = vmatprep.subr.mxu0 0.0
    %335 = vmatpush1.xpose.msra.mxu0 0.0
    %336 = vmatprep.subr.mxu0 0.0
    %337 = vmatpush1.xpose.msra.mxu0 0.0
    %338 = vmatprep.subr.mxu0 0.0
    %339 = vmatpush1.xpose.msra.mxu0 0.0
    %340 = vmatprep.subr.mxu0 0.0
    %341 = vmatpush1.xpose.msra.mxu0 0.0
    %342 = vmatprep.subr.mxu0 0.0
    %343 = vmatpush1.xpose.msra.mxu0 0.0
    %344 = vmatprep.subr.mxu0 0.0
    %345 = vmatpush1.xpose.msra.mxu0 0.0
    %346 = vmatprep.subr.mxu0 0.0
    %347 = vmatpush1.xpose.msra.mxu0 0.0
    %348 = vmatprep.subr.mxu0 0.0
    %349 = vmatpush1.xpose.msra.mxu0 0.0
    %350 = vmatprep.subr.mxu0 0.0
    %351 = vmatpush1.xpose.msra.mxu0 0.0
    %352 = vmatprep.subr.mxu0 0.0
    %353 = vmatpush1.xpose.msra.mxu0 0.0
    %354 = vmatprep.subr.mxu0 0.0
    %355 = vmatpush1.xpose.msra.mxu0 0.0
    %356 = vmatprep.subr.mxu0 0.0
    %357 = vmatpush1.xpose.msra.mxu0 0.0
    %358 = vmatprep.subr.mxu0 0.0
    %359 = vmatpush1.xpose.msra.mxu0 0.0
    %360 = vmatprep.subr.mxu0 0.0
    %361 = vmatpush1.xpose.msra.mxu0 0.0
    %362 = vmatprep.subr.mxu0 0.0
    %363 = vmatpush1.xpose.msra.mxu0 0.0
    %364 = vmatprep.subr.mxu0 0.0
    %365 = vmatpush1.xpose.msra.mxu0 0.0
    %366 = vmatprep.subr.mxu0 0.0
    %367 = vmatpush1.xpose.msra.mxu0 0.0
    %368 = vmatprep.subr.mxu0 0.0
    %369 = vmatpush1.xpose.msra.mxu0 0.0
    %370 = vmatprep.subr.mxu0 0.0
    %371 = vmatpush1.xpose.msra.mxu0 0.0
    %372 = vmatprep.subr.mxu0 0.0
    %373 = vmatpush1.xpose.msra.mxu0 0.0
    %374 = vmatprep.subr.mxu0 0.0
    %375 = vmatpush1.xpose.msra.mxu0 0.0
    %376 = vmatprep.subr.mxu0 0.0
    %377 = vmatpush1.xpose.msra.mxu0 0.0
    %378 = vmatprep.subr.mxu0 0.0
    %379 = vmatpush1.xpose.msra.mxu0 0.0
    %380 = vmatprep.subr.mxu0 0.0
    %381 = vmatpush1.xpose.msra.mxu0 0.0
    %382 = vmatprep.subr.mxu0 0.0
    %383 = vmatpush1.xpose.msra.mxu0 0.0
    %384 = vmatprep.subr.mxu0 0.0
    %385 = vmatpush1.xpose.msra.mxu0 0.0
    %386 = vmatprep.subr.mxu0 0.0
    %387 = vmatpush1.xpose.msra.mxu0 0.0
    %388 = vmatprep.subr.mxu0 0.0
    %389 = vmatpush1.xpose.msra.mxu0 0.0
    %390 = vmatprep.subr.mxu0 0.0
    %391 = vmatpush1.xpose.msra.mxu0 0.0
    %392 = vmatprep.subr.mxu0 0.0
    %393 = vmatpush1.xpose.msra.mxu0 0.0
    %394 = vmatprep.mubr.f32.mxu0 0.0
    %395 = vmatmul.mubr.f32.gmra.mrb[0].mxu0 %v326
    %v396 = vpop.f32.mrb[0].mxu0
    %v397 = vadd.f32 0.0, %v396
    %v398 = vpop.f32.mrb[0].mxu0
    %399 = vdwg.mxu0
    %400 = vrot.lane.b32.xlu0 %v162, 96
    %v401 = vpop.permute.xlu0 %400
    %v402 = vsel %vm173, %v162, 0
    %v404 = vsel %vm173, %v401, 0
    %406 = vmatprep.subr.mxu0 0.0
    %407 = vmatpush1.xpose.msra.mxu0 %v404
    %408 = vmatprep.subr.mxu0 0.0
    %409 = vmatpush1.xpose.msra.mxu0 0.0
    %410 = vmatprep.subr.mxu0 0.0
    %411 = vmatpush1.xpose.msra.mxu0 0.0
    %412 = vmatprep.subr.mxu0 0.0
    %413 = vmatpush1.xpose.msra.mxu0 0.0
    %414 = vmatprep.subr.mxu0 0.0
    %415 = vmatpush1.xpose.msra.mxu0 0.0
    %416 = vmatprep.subr.mxu0 0.0
    %417 = vmatpush1.xpose.msra.mxu0 0.0
    %418 = vmatprep.subr.mxu0 0.0
    %419 = vmatpush1.xpose.msra.mxu0 0.0
    %420 = vmatprep.subr.mxu0 0.0
    %421 = vmatpush1.xpose.msra.mxu0 0.0
    %422 = vmatprep.subr.mxu0 0.0
    %423 = vmatpush1.xpose.msra.mxu0 0.0
    %424 = vmatprep.subr.mxu0 0.0
    %425 = vmatpush1.xpose.msra.mxu0 0.0
    %426 = vmatprep.subr.mxu0 0.0
    %427 = vmatpush1.xpose.msra.mxu0 0.0
    %428 = vmatprep.subr.mxu0 0.0
    %429 = vmatpush1.xpose.msra.mxu0 0.0
    %430 = vmatprep.subr.mxu0 0.0
    %431 = vmatpush1.xpose.msra.mxu0 0.0
    %432 = vmatprep.subr.mxu0 0.0
    %433 = vmatpush1.xpose.msra.mxu0 0.0
    %434 = vmatprep.subr.mxu0 0.0
    %435 = vmatpush1.xpose.msra.mxu0 0.0
    %436 = vmatprep.subr.mxu0 0.0
    %437 = vmatpush1.xpose.msra.mxu0 0.0
    %438 = vmatprep.subr.mxu0 0.0
    %439 = vmatpush1.xpose.msra.mxu0 0.0
    %440 = vmatprep.subr.mxu0 0.0
    %441 = vmatpush1.xpose.msra.mxu0 0.0
    %442 = vmatprep.subr.mxu0 0.0
    %443 = vmatpush1.xpose.msra.mxu0 0.0
    %444 = vmatprep.subr.mxu0 0.0
    %445 = vmatpush1.xpose.msra.mxu0 0.0
    %446 = vmatprep.subr.mxu0 0.0
    %447 = vmatpush1.xpose.msra.mxu0 0.0
    %448 = vmatprep.subr.mxu0 0.0
    %449 = vmatpush1.xpose.msra.mxu0 0.0
    %450 = vmatprep.subr.mxu0 0.0
    %451 = vmatpush1.xpose.msra.mxu0 0.0
    %452 = vmatprep.subr.mxu0 0.0
    %453 = vmatpush1.xpose.msra.mxu0 0.0
    %454 = vmatprep.subr.mxu0 0.0
    %455 = vmatpush1.xpose.msra.mxu0 0.0
    %456 = vmatprep.subr.mxu0 0.0
    %457 = vmatpush1.xpose.msra.mxu0 0.0
    %458 = vmatprep.subr.mxu0 0.0
    %459 = vmatpush1.xpose.msra.mxu0 0.0
    %460 = vmatprep.subr.mxu0 0.0
    %461 = vmatpush1.xpose.msra.mxu0 0.0
    %462 = vmatprep.subr.mxu0 0.0
    %463 = vmatpush1.xpose.msra.mxu0 0.0
    %464 = vmatprep.subr.mxu0 0.0
    %465 = vmatpush1.xpose.msra.mxu0 0.0
    %466 = vmatprep.subr.mxu0 0.0
    %467 = vmatpush1.xpose.msra.mxu0 0.0
    %468 = vmatprep.subr.mxu0 0.0
    %469 = vmatpush1.xpose.msra.mxu0 0.0
    %470 = vmatprep.mubr.f32.mxu0 0.0
    %471 = vmatmul.mubr.f32.gmra.mrb[0].mxu0 %v402
    %v472 = vpop.f32.mrb[0].mxu0
    %v473 = vadd.f32 0.0, %v472
    %v474 = vpop.f32.mrb[0].mxu0
    %475 = vdwg.mxu0
    %476 = vrot.lane.b32.xlu0 %v164, 96
    %v477 = vpop.permute.xlu0 %476
    %v478 = vsel %vm173, %v164, 0
    %v480 = vsel %vm173, %v477, 0
    %482 = vmatprep.subr.mxu0 0.0
    %483 = vmatpush1.xpose.msra.mxu0 %v480
    %484 = vmatprep.subr.mxu0 0.0
    %485 = vmatpush1.xpose.msra.mxu0 0.0
    %486 = vmatprep.subr.mxu0 0.0
    %487 = vmatpush1.xpose.msra.mxu0 0.0
    %488 = vmatprep.subr.mxu0 0.0
    %489 = vmatpush1.xpose.msra.mxu0 0.0
    %490 = vmatprep.subr.mxu0 0.0
    %491 = vmatpush1.xpose.msra.mxu0 0.0
    %492 = vmatprep.subr.mxu0 0.0
    %493 = vmatpush1.xpose.msra.mxu0 0.0
    %494 = vmatprep.subr.mxu0 0.0
    %495 = vmatpush1.xpose.msra.mxu0 0.0
    %496 = vmatprep.subr.mxu0 0.0
    %497 = vmatpush1.xpose.msra.mxu0 0.0
    %498 = vmatprep.subr.mxu0 0.0
    %499 = vmatpush1.xpose.msra.mxu0 0.0
    %500 = vmatprep.subr.mxu0 0.0
    %501 = vmatpush1.xpose.msra.mxu0 0.0
    %502 = vmatprep.subr.mxu0 0.0
    %503 = vmatpush1.xpose.msra.mxu0 0.0
    %504 = vmatprep.subr.mxu0 0.0
    %505 = vmatpush1.xpose.msra.mxu0 0.0
    %506 = vmatprep.subr.mxu0 0.0
    %507 = vmatpush1.xpose.msra.mxu0 0.0
    %508 = vmatprep.subr.mxu0 0.0
    %509 = vmatpush1.xpose.msra.mxu0 0.0
    %510 = vmatprep.subr.mxu0 0.0
    %511 = vmatpush1.xpose.msra.mxu0 0.0
    %512 = vmatprep.subr.mxu0 0.0
    %513 = vmatpush1.xpose.msra.mxu0 0.0
    %514 = vmatprep.subr.mxu0 0.0
    %515 = vmatpush1.xpose.msra.mxu0 0.0
    %516 = vmatprep.subr.mxu0 0.0
    %517 = vmatpush1.xpose.msra.mxu0 0.0
    %518 = vmatprep.subr.mxu0 0.0
    %519 = vmatpush1.xpose.msra.mxu0 0.0
    %520 = vmatprep.subr.mxu0 0.0
    %521 = vmatpush1.xpose.msra.mxu0 0.0
    %522 = vmatprep.subr.mxu0 0.0
    %523 = vmatpush1.xpose.msra.mxu0 0.0
    %524 = vmatprep.subr.mxu0 0.0
    %525 = vmatpush1.xpose.msra.mxu0 0.0
    %526 = vmatprep.subr.mxu0 0.0
    %527 = vmatpush1.xpose.msra.mxu0 0.0
    %528 = vmatprep.subr.mxu0 0.0
    %529 = vmatpush1.xpose.msra.mxu0 0.0
    %530 = vmatprep.subr.mxu0 0.0
    %531 = vmatpush1.xpose.msra.mxu0 0.0
    %532 = vmatprep.subr.mxu0 0.0
    %533 = vmatpush1.xpose.msra.mxu0 0.0
    %534 = vmatprep.subr.mxu0 0.0
    %535 = vmatpush1.xpose.msra.mxu0 0.0
    %536 = vmatprep.subr.mxu0 0.0
    %537 = vmatpush1.xpose.msra.mxu0 0.0
    %538 = vmatprep.subr.mxu0 0.0
    %539 = vmatpush1.xpose.msra.mxu0 0.0
    %540 = vmatprep.subr.mxu0 0.0
    %541 = vmatpush1.xpose.msra.mxu0 0.0
    %542 = vmatprep.subr.mxu0 0.0
    %543 = vmatpush1.xpose.msra.mxu0 0.0
    %544 = vmatprep.subr.mxu0 0.0
    %545 = vmatpush1.xpose.msra.mxu0 0.0
    %546 = vmatprep.mubr.f32.mxu0 0.0
    %547 = vmatmul.mubr.f32.gmra.mrb[0].mxu0 %v478
    %v548 = vpop.f32.mrb[0].mxu0
    %v549 = vadd.f32 0.0, %v548
    %v550 = vpop.f32.mrb[0].mxu0
    %551 = vdwg.mxu0
    %552 = vrot.lane.b32.xlu0 %v166, 96
    %v553 = vpop.permute.xlu0 %552
    %v554 = vsel %vm173, %v166, 0
    %v556 = vsel %vm173, %v553, 0
    %558 = vmatprep.subr.mxu0 0.0
    %559 = vmatpush1.xpose.msra.mxu0 %v556
    %560 = vmatprep.subr.mxu0 0.0
    %561 = vmatpush1.xpose.msra.mxu0 0.0
    %562 = vmatprep.subr.mxu0 0.0
    %563 = vmatpush1.xpose.msra.mxu0 0.0
    %564 = vmatprep.subr.mxu0 0.0
    %565 = vmatpush1.xpose.msra.mxu0 0.0
    %566 = vmatprep.subr.mxu0 0.0
    %567 = vmatpush1.xpose.msra.mxu0 0.0
    %568 = vmatprep.subr.mxu0 0.0
    %569 = vmatpush1.xpose.msra.mxu0 0.0
    %570 = vmatprep.subr.mxu0 0.0
    %571 = vmatpush1.xpose.msra.mxu0 0.0
    %572 = vmatprep.subr.mxu0 0.0
    %573 = vmatpush1.xpose.msra.mxu0 0.0
    %574 = vmatprep.subr.mxu0 0.0
    %575 = vmatpush1.xpose.msra.mxu0 0.0
    %576 = vmatprep.subr.mxu0 0.0
    %577 = vmatpush1.xpose.msra.mxu0 0.0
    %578 = vmatprep.subr.mxu0 0.0
    %579 = vmatpush1.xpose.msra.mxu0 0.0
    %580 = vmatprep.subr.mxu0 0.0
    %581 = vmatpush1.xpose.msra.mxu0 0.0
    %582 = vmatprep.subr.mxu0 0.0
    %583 = vmatpush1.xpose.msra.mxu0 0.0
    %584 = vmatprep.subr.mxu0 0.0
    %585 = vmatpush1.xpose.msra.mxu0 0.0
    %586 = vmatprep.subr.mxu0 0.0
    %587 = vmatpush1.xpose.msra.mxu0 0.0
    %588 = vmatprep.subr.mxu0 0.0
    %589 = vmatpush1.xpose.msra.mxu0 0.0
    %590 = vmatprep.subr.mxu0 0.0
    %591 = vmatpush1.xpose.msra.mxu0 0.0
    %592 = vmatprep.subr.mxu0 0.0
    %593 = vmatpush1.xpose.msra.mxu0 0.0
    %594 = vmatprep.subr.mxu0 0.0
    %595 = vmatpush1.xpose.msra.mxu0 0.0
    %596 = vmatprep.subr.mxu0 0.0
    %597 = vmatpush1.xpose.msra.mxu0 0.0
    %598 = vmatprep.subr.mxu0 0.0
    %599 = vmatpush1.xpose.msra.mxu0 0.0
    %600 = vmatprep.subr.mxu0 0.0
    %601 = vmatpush1.xpose.msra.mxu0 0.0
    %602 = vmatprep.subr.mxu0 0.0
    %603 = vmatpush1.xpose.msra.mxu0 0.0
    %604 = vmatprep.subr.mxu0 0.0
    %605 = vmatpush1.xpose.msra.mxu0 0.0
    %606 = vmatprep.subr.mxu0 0.0
    %607 = vmatpush1.xpose.msra.mxu0 0.0
    %608 = vmatprep.subr.mxu0 0.0
    %609 = vmatpush1.xpose.msra.mxu0 0.0
    %610 = vmatprep.subr.mxu0 0.0
    %611 = vmatpush1.xpose.msra.mxu0 0.0
    %612 = vmatprep.subr.mxu0 0.0
    %613 = vmatpush1.xpose.msra.mxu0 0.0
    %614 = vmatprep.subr.mxu0 0.0
    %615 = vmatpush1.xpose.msra.mxu0 0.0
    %616 = vmatprep.subr.mxu0 0.0
    %617 = vmatpush1.xpose.msra.mxu0 0.0
    %618 = vmatprep.subr.mxu0 0.0
    %619 = vmatpush1.xpose.msra.mxu0 0.0
    %620 = vmatprep.subr.mxu0 0.0
    %621 = vmatpush1.xpose.msra.mxu0 0.0
    %622 = vmatprep.mubr.f32.mxu0 0.0
    %623 = vmatmul.mubr.f32.gmra.mrb[0].mxu0 %v554
    %v624 = vpop.f32.mrb[0].mxu0
    %v625 = vadd.f32 0.0, %v624
    %v626 = vpop.f32.mrb[0].mxu0
    %627 = vdwg.mxu0
    %628 = vrot.lane.b32.xlu0 %v168, 96
    %v629 = vpop.permute.xlu0 %628
    %v630 = vsel %vm173, %v168, 0
    %v632 = vsel %vm173, %v629, 0
    %634 = vmatprep.subr.mxu0 0.0
    %635 = vmatpush1.xpose.msra.mxu0 %v632
    %636 = vmatprep.subr.mxu0 0.0
    %637 = vmatpush1.xpose.msra.mxu0 0.0
    %638 = vmatprep.subr.mxu0 0.0
    %639 = vmatpush1.xpose.msra.mxu0 0.0
    %640 = vmatprep.subr.mxu0 0.0
    %641 = vmatpush1.xpose.msra.mxu0 0.0
    %642 = vmatprep.subr.mxu0 0.0
    %643 = vmatpush1.xpose.msra.mxu0 0.0
    %644 = vmatprep.subr.mxu0 0.0
    %645 = vmatpush1.xpose.msra.mxu0 0.0
    %646 = vmatprep.subr.mxu0 0.0
    %647 = vmatpush1.xpose.msra.mxu0 0.0
    %648 = vmatprep.subr.mxu0 0.0
    %649 = vmatpush1.xpose.msra.mxu0 0.0
    %650 = vmatprep.subr.mxu0 0.0
    %651 = vmatpush1.xpose.msra.mxu0 0.0
    %652 = vmatprep.subr.mxu0 0.0
    %653 = vmatpush1.xpose.msra.mxu0 0.0
    %654 = vmatprep.subr.mxu0 0.0
    %655 = vmatpush1.xpose.msra.mxu0 0.0
    %656 = vmatprep.subr.mxu0 0.0
    %657 = vmatpush1.xpose.msra.mxu0 0.0
    %658 = vmatprep.subr.mxu0 0.0
    %659 = vmatpush1.xpose.msra.mxu0 0.0
    %660 = vmatprep.subr.mxu0 0.0
    %661 = vmatpush1.xpose.msra.mxu0 0.0
    %662 = vmatprep.subr.mxu0 0.0
    %663 = vmatpush1.xpose.msra.mxu0 0.0
    %664 = vmatprep.subr.mxu0 0.0
    %665 = vmatpush1.xpose.msra.mxu0 0.0
    %666 = vmatprep.subr.mxu0 0.0
    %667 = vmatpush1.xpose.msra.mxu0 0.0
    %668 = vmatprep.subr.mxu0 0.0
    %669 = vmatpush1.xpose.msra.mxu0 0.0
    %670 = vmatprep.subr.mxu0 0.0
    %671 = vmatpush1.xpose.msra.mxu0 0.0
    %672 = vmatprep.subr.mxu0 0.0
    %673 = vmatpush1.xpose.msra.mxu0 0.0
    %674 = vmatprep.subr.mxu0 0.0
    %675 = vmatpush1.xpose.msra.mxu0 0.0
    %676 = vmatprep.subr.mxu0 0.0
    %677 = vmatpush1.xpose.msra.mxu0 0.0
    %678 = vmatprep.subr.mxu0 0.0
    %679 = vmatpush1.xpose.msra.mxu0 0.0
    %680 = vmatprep.subr.mxu0 0.0
    %681 = vmatpush1.xpose.msra.mxu0 0.0
    %682 = vmatprep.subr.mxu0 0.0
    %683 = vmatpush1.xpose.msra.mxu0 0.0
    %684 = vmatprep.subr.mxu0 0.0
    %685 = vmatpush1.xpose.msra.mxu0 0.0
    %686 = vmatprep.subr.mxu0 0.0
    %687 = vmatpush1.xpose.msra.mxu0 0.0
    %688 = vmatprep.subr.mxu0 0.0
    %689 = vmatpush1.xpose.msra.mxu0 0.0
    %690 = vmatprep.subr.mxu0 0.0
    %691 = vmatpush1.xpose.msra.mxu0 0.0
    %692 = vmatprep.subr.mxu0 0.0
    %693 = vmatpush1.xpose.msra.mxu0 0.0
    %694 = vmatprep.subr.mxu0 0.0
    %695 = vmatpush1.xpose.msra.mxu0 0.0
    %696 = vmatprep.subr.mxu0 0.0
    %697 = vmatpush1.xpose.msra.mxu0 0.0
    %698 = vmatprep.mubr.f32.mxu0 0.0
    %699 = vmatmul.mubr.f32.gmra.mrb[0].mxu0 %v630
    %v700 = vpop.f32.mrb[0].mxu0
    %v701 = vadd.f32 0.0, %v700
    %v702 = vpop.f32.mrb[0].mxu0
    %703 = vdwg.mxu0
    %704 = vrot.lane.b32.xlu0 %v170, 96
    %v705 = vpop.permute.xlu0 %704
    %v706 = vsel %vm173, %v170, 0
    %v708 = vsel %vm173, %v705, 0
    %710 = vmatprep.subr.mxu0 0.0
    %711 = vmatpush1.xpose.msra.mxu0 %v708
    %712 = vmatprep.subr.mxu0 0.0
    %713 = vmatpush1.xpose.msra.mxu0 0.0
    %714 = vmatprep.subr.mxu0 0.0
    %715 = vmatpush1.xpose.msra.mxu0 0.0
    %716 = vmatprep.subr.mxu0 0.0
    %717 = vmatpush1.xpose.msra.mxu0 0.0
    %718 = vmatprep.subr.mxu0 0.0
    %719 = vmatpush1.xpose.msra.mxu0 0.0
    %720 = vmatprep.subr.mxu0 0.0
    %721 = vmatpush1.xpose.msra.mxu0 0.0
    %722 = vmatprep.subr.mxu0 0.0
    %723 = vmatpush1.xpose.msra.mxu0 0.0
    %724 = vmatprep.subr.mxu0 0.0
    %725 = vmatpush1.xpose.msra.mxu0 0.0
    %726 = vmatprep.subr.mxu0 0.0
    %727 = vmatpush1.xpose.msra.mxu0 0.0
    %728 = vmatprep.subr.mxu0 0.0
    %729 = vmatpush1.xpose.msra.mxu0 0.0
    %730 = vmatprep.subr.mxu0 0.0
    %731 = vmatpush1.xpose.msra.mxu0 0.0
    %732 = vmatprep.subr.mxu0 0.0
    %733 = vmatpush1.xpose.msra.mxu0 0.0
    %734 = vmatprep.subr.mxu0 0.0
    %735 = vmatpush1.xpose.msra.mxu0 0.0
    %736 = vmatprep.subr.mxu0 0.0
    %737 = vmatpush1.xpose.msra.mxu0 0.0
    %738 = vmatprep.subr.mxu0 0.0
    %739 = vmatpush1.xpose.msra.mxu0 0.0
    %740 = vmatprep.subr.mxu0 0.0
    %741 = vmatpush1.xpose.msra.mxu0 0.0
    %742 = vmatprep.subr.mxu0 0.0
    %743 = vmatpush1.xpose.msra.mxu0 0.0
    %744 = vmatprep.subr.mxu0 0.0
    %745 = vmatpush1.xpose.msra.mxu0 0.0
    %746 = vmatprep.subr.mxu0 0.0
    %747 = vmatpush1.xpose.msra.mxu0 0.0
    %748 = vmatprep.subr.mxu0 0.0
    %749 = vmatpush1.xpose.msra.mxu0 0.0
    %750 = vmatprep.subr.mxu0 0.0
    %751 = vmatpush1.xpose.msra.mxu0 0.0
    %752 = vmatprep.subr.mxu0 0.0
    %753 = vmatpush1.xpose.msra.mxu0 0.0
    %754 = vmatprep.subr.mxu0 0.0
    %755 = vmatpush1.xpose.msra.mxu0 0.0
    %756 = vmatprep.subr.mxu0 0.0
    %757 = vmatpush1.xpose.msra.mxu0 0.0
    %758 = vmatprep.subr.mxu0 0.0
    %759 = vmatpush1.xpose.msra.mxu0 0.0
    %760 = vmatprep.subr.mxu0 0.0
    %761 = vmatpush1.xpose.msra.mxu0 0.0
    %762 = vmatprep.subr.mxu0 0.0
    %763 = vmatpush1.xpose.msra.mxu0 0.0
    %764 = vmatprep.subr.mxu0 0.0
    %765 = vmatpush1.xpose.msra.mxu0 0.0
    %766 = vmatprep.subr.mxu0 0.0
    %767 = vmatpush1.xpose.msra.mxu0 0.0
    %768 = vmatprep.subr.mxu0 0.0
    %769 = vmatpush1.xpose.msra.mxu0 0.0
    %770 = vmatprep.subr.mxu0 0.0
    %771 = vmatpush1.xpose.msra.mxu0 0.0
    %772 = vmatprep.subr.mxu0 0.0
    %773 = vmatpush1.xpose.msra.mxu0 0.0
    %774 = vmatprep.mubr.f32.mxu0 0.0
    %775 = vmatmul.mubr.f32.gmra.mrb[0].mxu0 %v706
    %v776 = vpop.f32.mrb[0].mxu0
    %v777 = vadd.f32 0.0, %v776
    %v778 = vpop.f32.mrb[0].mxu0
    %779 = vdwg.mxu0
    %v780 = vmul.f32 %v245, 0.35355338
    %v781 = vmul.f32 %v321, 0.35355338
    %v782 = vmul.f32 %v397, 0.35355338
    %v783 = vmul.f32 %v473, 0.35355338
    %v784 = vmul.f32 %v549, 0.35355338
    %v785 = vmul.f32 %v625, 0.35355338
    %v786 = vmul.f32 %v701, 0.35355338
    %v787 = vmul.f32 %v777, 0.35355338
    %v788 = vsel %vm173, %v780, -inf
    %789 = vmax.xlane.f32.xlu0 %v788
    %v790 = vpop.xlane.xlu0 %789
    %v791 = vsel %vm173, %v781, -inf
    %792 = vmax.xlane.f32.xlu0 %v791
    %v793 = vpop.xlane.xlu0 %792
    %v794 = vsel %vm173, %v782, -inf
    %795 = vmax.xlane.f32.xlu0 %v794
    %v796 = vpop.xlane.xlu0 %795
    %v797 = vsel %vm173, %v783, -inf
    %798 = vmax.xlane.f32.xlu0 %v797
    %v799 = vpop.xlane.xlu0 %798
    %v800 = vsel %vm173, %v784, -inf
    %801 = vmax.xlane.f32.xlu0 %v800
    %v802 = vpop.xlane.xlu0 %801
    %v803 = vsel %vm173, %v785, -inf
    %804 = vmax.xlane.f32.xlu0 %v803
    %v805 = vpop.xlane.xlu0 %804
    %v806 = vsel %vm173, %v786, -inf
    %807 = vmax.xlane.f32.xlu0 %v806
    %v808 = vpop.xlane.xlu0 %807
    %v809 = vsel %vm173, %v787, -inf
    %810 = vmax.xlane.f32.xlu0 %v809
    %v811 = vpop.xlane.xlu0 %810
    %v812 = vsub.f32 %v780, %v790
    %v813 = vsub.f32 %v781, %v793
    %v814 = vsub.f32 %v782, %v796
    %v815 = vsub.f32 %v783, %v799
    %v816 = vsub.f32 %v784, %v802
    %v817 = vsub.f32 %v785, %v805
    %v818 = vsub.f32 %v786, %v808
    %v819 = vsub.f32 %v787, %v811
    %v820 = vmul.f32 %v812, 1.442695
    %v821 = vpow.pop %v820
    %v822 = vmul.f32 %v813, 1.442695
    %v823 = vpow.pop %v822
    %v824 = vmul.f32 %v814, 1.442695
    %v825 = vpow.pop %v824
    %v826 = vmul.f32 %v815, 1.442695
    %v827 = vpow.pop %v826
    %v828 = vmul.f32 %v816, 1.442695
    %v829 = vpow.pop %v828
    %v830 = vmul.f32 %v817, 1.442695
    %v831 = vpow.pop %v830
    %v832 = vmul.f32 %v818, 1.442695
    %v833 = vpow.pop %v832
    %v834 = vmul.f32 %v819, 1.442695
    %v835 = vpow.pop %v834
    %v836 = vsel %vm173, %v821, 0.0
    %837 = vadd.xlane.f32.xlu0 %v836
    %v838 = vpop.xlane.xlu0 %837
    %v839 = vsel %vm173, %v823, 0.0
    %840 = vadd.xlane.f32.xlu0 %v839
    %v841 = vpop.xlane.xlu0 %840
    %v842 = vsel %vm173, %v825, 0.0
    %843 = vadd.xlane.f32.xlu0 %v842
    %v844 = vpop.xlane.xlu0 %843
    %v845 = vsel %vm173, %v827, 0.0
    %846 = vadd.xlane.f32.xlu0 %v845
    %v847 = vpop.xlane.xlu0 %846
    %v848 = vsel %vm173, %v829, 0.0
    %849 = vadd.xlane.f32.xlu0 %v848
    %v850 = vpop.xlane.xlu0 %849
    %v851 = vsel %vm173, %v831, 0.0
    %852 = vadd.xlane.f32.xlu0 %v851
    %v853 = vpop.xlane.xlu0 %852
    %v854 = vsel %vm173, %v833, 0.0
    %855 = vadd.xlane.f32.xlu0 %v854
    %v856 = vpop.xlane.xlu0 %855
    %v857 = vsel %vm173, %v835, 0.0
    %858 = vadd.xlane.f32.xlu0 %v857
    %v859 = vpop.xlane.xlu0 %858
    %v860 = vrcp.pop %v838
    %v861 = vmul.f32 %v821, %v860
    %v862 = vrcp.pop %v841
    %v863 = vmul.f32 %v823, %v862
    %v864 = vrcp.pop %v844
    %v865 = vmul.f32 %v825, %v864
    %v866 = vrcp.pop %v847
    %v867 = vmul.f32 %v827, %v866
    %v868 = vrcp.pop %v850
    %v869 = vmul.f32 %v829, %v868
    %v870 = vrcp.pop %v853
    %v871 = vmul.f32 %v831, %v870
    %v872 = vrcp.pop %v856
    %v873 = vmul.f32 %v833, %v872
    %v874 = vrcp.pop %v859
    %v875 = vmul.f32 %v835, %v874
    %876 = vrot.lane.b32.xlu0 %v149, 64
    %v877 = vpop.permute.xlu0 %876
    %v880 = vsel %vm173, %v861, 0
    %882 = vmatprep.subr.mxu0 0.0
    %883 = vmatpush1.msra.mxu0 %v877
    %884 = vmatprep.subr.mxu0 0.0
    %885 = vmatpush1.msra.mxu0 0.0
    %886 = vmatprep.subr.mxu0 0.0
    %887 = vmatpush1.msra.mxu0 0.0
    %888 = vmatprep.subr.mxu0 0.0
    %889 = vmatpush1.msra.mxu0 0.0
    %890 = vmatprep.subr.mxu0 0.0
    %891 = vmatpush1.msra.mxu0 0.0
    %892 = vmatprep.subr.mxu0 0.0
    %893 = vmatpush1.msra.mxu0 0.0
    %894 = vmatprep.subr.mxu0 0.0
    %895 = vmatpush1.msra.mxu0 0.0
    %896 = vmatprep.subr.mxu0 0.0
    %897 = vmatpush1.msra.mxu0 0.0
    %898 = vmatprep.subr.mxu0 0.0
    %899 = vmatpush1.msra.mxu0 0.0
    %900 = vmatprep.subr.mxu0 0.0
    %901 = vmatpush1.msra.mxu0 0.0
    %902 = vmatprep.subr.mxu0 0.0
    %903 = vmatpush1.msra.mxu0 0.0
    %904 = vmatprep.subr.mxu0 0.0
    %905 = vmatpush1.msra.mxu0 0.0
    %906 = vmatprep.subr.mxu0 0.0
    %907 = vmatpush1.msra.mxu0 0.0
    %908 = vmatprep.subr.mxu0 0.0
    %909 = vmatpush1.msra.mxu0 0.0
    %910 = vmatprep.subr.mxu0 0.0
    %911 = vmatpush1.msra.mxu0 0.0
    %912 = vmatprep.subr.mxu0 0.0
    %913 = vmatpush1.msra.mxu0 0.0
    %914 = vmatprep.subr.mxu0 0.0
    %915 = vmatpush1.msra.mxu0 0.0
    %916 = vmatprep.subr.mxu0 0.0
    %917 = vmatpush1.msra.mxu0 0.0
    %918 = vmatprep.subr.mxu0 0.0
    %919 = vmatpush1.msra.mxu0 0.0
    %920 = vmatprep.subr.mxu0 0.0
    %921 = vmatpush1.msra.mxu0 0.0
    %922 = vmatprep.subr.mxu0 0.0
    %923 = vmatpush1.msra.mxu0 0.0
    %924 = vmatprep.subr.mxu0 0.0
    %925 = vmatpush1.msra.mxu0 0.0
    %926 = vmatprep.subr.mxu0 0.0
    %927 = vmatpush1.msra.mxu0 0.0
    %928 = vmatprep.subr.mxu0 0.0
    %929 = vmatpush1.msra.mxu0 0.0
    %930 = vmatprep.subr.mxu0 0.0
    %931 = vmatpush1.msra.mxu0 0.0
    %932 = vmatprep.subr.mxu0 0.0
    %933 = vmatpush1.msra.mxu0 0.0
    %934 = vmatprep.subr.mxu0 0.0
    %935 = vmatpush1.msra.mxu0 0.0
    %936 = vmatprep.subr.mxu0 0.0
    %937 = vmatpush1.msra.mxu0 0.0
    %938 = vmatprep.subr.mxu0 0.0
    %939 = vmatpush1.msra.mxu0 0.0
    %940 = vmatprep.subr.mxu0 0.0
    %941 = vmatpush1.msra.mxu0 0.0
    %942 = vmatprep.subr.mxu0 0.0
    %943 = vmatpush1.msra.mxu0 0.0
    %944 = vmatprep.subr.mxu0 0.0
    %945 = vmatpush1.msra.mxu0 0.0
    %946 = vmatprep.mubr.f32.mxu0 0.0
    %947 = vmatmul.mubr.f32.gmra.mrb[0].mxu0 %v880
    %v948 = vpop.f32.mrb[0].mxu0
    %v949 = vadd.f32 0.0, %v948
    %v950 = vpop.f32.mrb[0].mxu0
    %951 = vdwg.mxu0
    %952 = vrot.lane.b32.xlu0 %v154, 64
    %v953 = vpop.permute.xlu0 %952
    %v956 = vsel %vm173, %v863, 0
    %958 = vmatprep.subr.mxu0 0.0
    %959 = vmatpush1.msra.mxu0 %v953
    %960 = vmatprep.subr.mxu0 0.0
    %961 = vmatpush1.msra.mxu0 0.0
    %962 = vmatprep.subr.mxu0 0.0
    %963 = vmatpush1.msra.mxu0 0.0
    %964 = vmatprep.subr.mxu0 0.0
    %965 = vmatpush1.msra.mxu0 0.0
    %966 = vmatprep.subr.mxu0 0.0
    %967 = vmatpush1.msra.mxu0 0.0
    %968 = vmatprep.subr.mxu0 0.0
    %969 = vmatpush1.msra.mxu0 0.0
    %970 = vmatprep.subr.mxu0 0.0
    %971 = vmatpush1.msra.mxu0 0.0
    %972 = vmatprep.subr.mxu0 0.0
    %973 = vmatpush1.msra.mxu0 0.0
    %974 = vmatprep.subr.mxu0 0.0
    %975 = vmatpush1.msra.mxu0 0.0
    %976 = vmatprep.subr.mxu0 0.0
    %977 = vmatpush1.msra.mxu0 0.0
    %978 = vmatprep.subr.mxu0 0.0
    %979 = vmatpush1.msra.mxu0 0.0
    %980 = vmatprep.subr.mxu0 0.0
    %981 = vmatpush1.msra.mxu0 0.0
    %982 = vmatprep.subr.mxu0 0.0
    %983 = vmatpush1.msra.mxu0 0.0
    %984 = vmatprep.subr.mxu0 0.0
    %985 = vmatpush1.msra.mxu0 0.0
    %986 = vmatprep.subr.mxu0 0.0
    %987 = vmatpush1.msra.mxu0 0.0
    %988 = vmatprep.subr.mxu0 0.0
    %989 = vmatpush1.msra.mxu0 0.0
    %990 = vmatprep.subr.mxu0 0.0
    %991 = vmatpush1.msra.mxu0 0.0
    %992 = vmatprep.subr.mxu0 0.0
    %993 = vmatpush1.msra.mxu0 0.0
    %994 = vmatprep.subr.mxu0 0.0
    %995 = vmatpush1.msra.mxu0 0.0
    %996 = vmatprep.subr.mxu0 0.0
    %997 = vmatpush1.msra.mxu0 0.0
    %998 = vmatprep.subr.mxu0 0.0
    %999 = vmatpush1.msra.mxu0 0.0
    %1000 = vmatprep.subr.mxu0 0.0
    %1001 = vmatpush1.msra.mxu0 0.0
    %1002 = vmatprep.subr.mxu0 0.0
    %1003 = vmatpush1.msra.mxu0 0.0
    %1004 = vmatprep.subr.mxu0 0.0
    %1005 = vmatpush1.msra.mxu0 0.0
    %1006 = vmatprep.subr.mxu0 0.0
    %1007 = vmatpush1.msra.mxu0 0.0
    %1008 = vmatprep.subr.mxu0 0.0
    %1009 = vmatpush1.msra.mxu0 0.0
    %1010 = vmatprep.subr.mxu0 0.0
    %1011 = vmatpush1.msra.mxu0 0.0
    %1012 = vmatprep.subr.mxu0 0.0
    %1013 = vmatpush1.msra.mxu0 0.0
    %1014 = vmatprep.subr.mxu0 0.0
    %1015 = vmatpush1.msra.mxu0 0.0
    %1016 = vmatprep.subr.mxu0 0.0
    %1017 = vmatpush1.msra.mxu0 0.0
    %1018 = vmatprep.subr.mxu0 0.0
    %1019 = vmatpush1.msra.mxu0 0.0
    %1020 = vmatprep.subr.mxu0 0.0
    %1021 = vmatpush1.msra.mxu0 0.0
    %1022 = vmatprep.mubr.f32.mxu0 0.0
    %1023 = vmatmul.mubr.f32.gmra.mrb[0].mxu0 %v956
    %v1024 = vpop.f32.mrb[0].mxu0
    %v1025 = vadd.f32 0.0, %v1024
    %v1026 = vpop.f32.mrb[0].mxu0
    %1027 = vdwg.mxu0
    %1028 = vrot.lane.b32.xlu0 %v160, 64
    %v1029 = vpop.permute.xlu0 %1028
    %v1032 = vsel %vm173, %v865, 0
    %1034 = vmatprep.subr.mxu0 0.0
    %1035 = vmatpush1.msra.mxu0 %v1029
    %1036 = vmatprep.subr.mxu0 0.0
    %1037 = vmatpush1.msra.mxu0 0.0
    %1038 = vmatprep.subr.mxu0 0.0
    %1039 = vmatpush1.msra.mxu0 0.0
    %1040 = vmatprep.subr.mxu0 0.0
    %1041 = vmatpush1.msra.mxu0 0.0
    %1042 = vmatprep.subr.mxu0 0.0
    %1043 = vmatpush1.msra.mxu0 0.0
    %1044 = vmatprep.subr.mxu0 0.0
    %1045 = vmatpush1.msra.mxu0 0.0
    %1046 = vmatprep.subr.mxu0 0.0
    %1047 = vmatpush1.msra.mxu0 0.0
    %1048 = vmatprep.subr.mxu0 0.0
    %1049 = vmatpush1.msra.mxu0 0.0
    %1050 = vmatprep.subr.mxu0 0.0
    %1051 = vmatpush1.msra.mxu0 0.0
    %1052 = vmatprep.subr.mxu0 0.0
    %1053 = vmatpush1.msra.mxu0 0.0
    %1054 = vmatprep.subr.mxu0 0.0
    %1055 = vmatpush1.msra.mxu0 0.0
    %1056 = vmatprep.subr.mxu0 0.0
    %1057 = vmatpush1.msra.mxu0 0.0
    %1058 = vmatprep.subr.mxu0 0.0
    %1059 = vmatpush1.msra.mxu0 0.0
    %1060 = vmatprep.subr.mxu0 0.0
    %1061 = vmatpush1.msra.mxu0 0.0
    %1062 = vmatprep.subr.mxu0 0.0
    %1063 = vmatpush1.msra.mxu0 0.0
    %1064 = vmatprep.subr.mxu0 0.0
    %1065 = vmatpush1.msra.mxu0 0.0
    %1066 = vmatprep.subr.mxu0 0.0
    %1067 = vmatpush1.msra.mxu0 0.0
    %1068 = vmatprep.subr.mxu0 0.0
    %1069 = vmatpush1.msra.mxu0 0.0
    %1070 = vmatprep.subr.mxu0 0.0
    %1071 = vmatpush1.msra.mxu0 0.0
    %1072 = vmatprep.subr.mxu0 0.0
    %1073 = vmatpush1.msra.mxu0 0.0
    %1074 = vmatprep.subr.mxu0 0.0
    %1075 = vmatpush1.msra.mxu0 0.0
    %1076 = vmatprep.subr.mxu0 0.0
    %1077 = vmatpush1.msra.mxu0 0.0
    %1078 = vmatprep.subr.mxu0 0.0
    %1079 = vmatpush1.msra.mxu0 0.0
    %1080 = vmatprep.subr.mxu0 0.0
    %1081 = vmatpush1.msra.mxu0 0.0
    %1082 = vmatprep.subr.mxu0 0.0
    %1083 = vmatpush1.msra.mxu0 0.0
    %1084 = vmatprep.subr.mxu0 0.0
    %1085 = vmatpush1.msra.mxu0 0.0
    %1086 = vmatprep.subr.mxu0 0.0
    %1087 = vmatpush1.msra.mxu0 0.0
    %1088 = vmatprep.subr.mxu0 0.0
    %1089 = vmatpush1.msra.mxu0 0.0
    %1090 = vmatprep.subr.mxu0 0.0
    %1091 = vmatpush1.msra.mxu0 0.0
    %1092 = vmatprep.subr.mxu0 0.0
    %1093 = vmatpush1.msra.mxu0 0.0
    %1094 = vmatprep.subr.mxu0 0.0
    %1095 = vmatpush1.msra.mxu0 0.0
    %1096 = vmatprep.subr.mxu0 0.0
    %1097 = vmatpush1.msra.mxu0 0.0
    %1098 = vmatprep.mubr.f32.mxu0 0.0
    %1099 = vmatmul.mubr.f32.gmra.mrb[0].mxu0 %v1032
    %v1100 = vpop.f32.mrb[0].mxu0
    %v1101 = vadd.f32 0.0, %v1100
    %v1102 = vpop.f32.mrb[0].mxu0
    %1103 = vdwg.mxu0
    %1104 = vrot.lane.b32.xlu0 %v162, 64
    %v1105 = vpop.permute.xlu0 %1104
    %v1108 = vsel %vm173, %v867, 0
    %1110 = vmatprep.subr.mxu0 0.0
    %1111 = vmatpush1.msra.mxu0 %v1105
    %1112 = vmatprep.subr.mxu0 0.0
    %1113 = vmatpush1.msra.mxu0 0.0
    %1114 = vmatprep.subr.mxu0 0.0
    %1115 = vmatpush1.msra.mxu0 0.0
    %1116 = vmatprep.subr.mxu0 0.0
    %1117 = vmatpush1.msra.mxu0 0.0
    %1118 = vmatprep.subr.mxu0 0.0
    %1119 = vmatpush1.msra.mxu0 0.0
    %1120 = vmatprep.subr.mxu0 0.0
    %1121 = vmatpush1.msra.mxu0 0.0
    %1122 = vmatprep.subr.mxu0 0.0
    %1123 = vmatpush1.msra.mxu0 0.0
    %1124 = vmatprep.subr.mxu0 0.0
    %1125 = vmatpush1.msra.mxu0 0.0
    %1126 = vmatprep.subr.mxu0 0.0
    %1127 = vmatpush1.msra.mxu0 0.0
    %1128 = vmatprep.subr.mxu0 0.0
    %1129 = vmatpush1.msra.mxu0 0.0
    %1130 = vmatprep.subr.mxu0 0.0
    %1131 = vmatpush1.msra.mxu0 0.0
    %1132 = vmatprep.subr.mxu0 0.0
    %1133 = vmatpush1.msra.mxu0 0.0
    %1134 = vmatprep.subr.mxu0 0.0
    %1135 = vmatpush1.msra.mxu0 0.0
    %1136 = vmatprep.subr.mxu0 0.0
    %1137 = vmatpush1.msra.mxu0 0.0
    %1138 = vmatprep.subr.mxu0 0.0
    %1139 = vmatpush1.msra.mxu0 0.0
    %1140 = vmatprep.subr.mxu0 0.0
    %1141 = vmatpush1.msra.mxu0 0.0
    %1142 = vmatprep.subr.mxu0 0.0
    %1143 = vmatpush1.msra.mxu0 0.0
    %1144 = vmatprep.subr.mxu0 0.0
    %1145 = vmatpush1.msra.mxu0 0.0
    %1146 = vmatprep.subr.mxu0 0.0
    %1147 = vmatpush1.msra.mxu0 0.0
    %1148 = vmatprep.subr.mxu0 0.0
    %1149 = vmatpush1.msra.mxu0 0.0
    %1150 = vmatprep.subr.mxu0 0.0
    %1151 = vmatpush1.msra.mxu0 0.0
    %1152 = vmatprep.subr.mxu0 0.0
    %1153 = vmatpush1.msra.mxu0 0.0
    %1154 = vmatprep.subr.mxu0 0.0
    %1155 = vmatpush1.msra.mxu0 0.0
    %1156 = vmatprep.subr.mxu0 0.0
    %1157 = vmatpush1.msra.mxu0 0.0
    %1158 = vmatprep.subr.mxu0 0.0
    %1159 = vmatpush1.msra.mxu0 0.0
    %1160 = vmatprep.subr.mxu0 0.0
    %1161 = vmatpush1.msra.mxu0 0.0
    %1162 = vmatprep.subr.mxu0 0.0
    %1163 = vmatpush1.msra.mxu0 0.0
    %1164 = vmatprep.subr.mxu0 0.0
    %1165 = vmatpush1.msra.mxu0 0.0
    %1166 = vmatprep.subr.mxu0 0.0
    %1167 = vmatpush1.msra.mxu0 0.0
    %1168 = vmatprep.subr.mxu0 0.0
    %1169 = vmatpush1.msra.mxu0 0.0
    %1170 = vmatprep.subr.mxu0 0.0
    %1171 = vmatpush1.msra.mxu0 0.0
    %1172 = vmatprep.subr.mxu0 0.0
    %1173 = vmatpush1.msra.mxu0 0.0
    %1174 = vmatprep.mubr.f32.mxu0 0.0
    %1175 = vmatmul.mubr.f32.gmra.mrb[0].mxu0 %v1108
    %v1176 = vpop.f32.mrb[0].mxu0
    %v1177 = vadd.f32 0.0, %v1176
    %v1178 = vpop.f32.mrb[0].mxu0
    %1179 = vdwg.mxu0
    %1180 = vrot.lane.b32.xlu0 %v164, 64
    %v1181 = vpop.permute.xlu0 %1180
    %v1184 = vsel %vm173, %v869, 0
    %1186 = vmatprep.subr.mxu0 0.0
    %1187 = vmatpush1.msra.mxu0 %v1181
    %1188 = vmatprep.subr.mxu0 0.0
    %1189 = vmatpush1.msra.mxu0 0.0
    %1190 = vmatprep.subr.mxu0 0.0
    %1191 = vmatpush1.msra.mxu0 0.0
    %1192 = vmatprep.subr.mxu0 0.0
    %1193 = vmatpush1.msra.mxu0 0.0
    %1194 = vmatprep.subr.mxu0 0.0
    %1195 = vmatpush1.msra.mxu0 0.0
    %1196 = vmatprep.subr.mxu0 0.0
    %1197 = vmatpush1.msra.mxu0 0.0
    %1198 = vmatprep.subr.mxu0 0.0
    %1199 = vmatpush1.msra.mxu0 0.0
    %1200 = vmatprep.subr.mxu0 0.0
    %1201 = vmatpush1.msra.mxu0 0.0
    %1202 = vmatprep.subr.mxu0 0.0
    %1203 = vmatpush1.msra.mxu0 0.0
    %1204 = vmatprep.subr.mxu0 0.0
    %1205 = vmatpush1.msra.mxu0 0.0
    %1206 = vmatprep.subr.mxu0 0.0
    %1207 = vmatpush1.msra.mxu0 0.0
    %1208 = vmatprep.subr.mxu0 0.0
    %1209 = vmatpush1.msra.mxu0 0.0
    %1210 = vmatprep.subr.mxu0 0.0
    %1211 = vmatpush1.msra.mxu0 0.0
    %1212 = vmatprep.subr.mxu0 0.0
    %1213 = vmatpush1.msra.mxu0 0.0
    %1214 = vmatprep.subr.mxu0 0.0
    %1215 = vmatpush1.msra.mxu0 0.0
    %1216 = vmatprep.subr.mxu0 0.0
    %1217 = vmatpush1.msra.mxu0 0.0
    %1218 = vmatprep.subr.mxu0 0.0
    %1219 = vmatpush1.msra.mxu0 0.0
    %1220 = vmatprep.subr.mxu0 0.0
    %1221 = vmatpush1.msra.mxu0 0.0
    %1222 = vmatprep.subr.mxu0 0.0
    %1223 = vmatpush1.msra.mxu0 0.0
    %1224 = vmatprep.subr.mxu0 0.0
    %1225 = vmatpush1.msra.mxu0 0.0
    %1226 = vmatprep.subr.mxu0 0.0
    %1227 = vmatpush1.msra.mxu0 0.0
    %1228 = vmatprep.subr.mxu0 0.0
    %1229 = vmatpush1.msra.mxu0 0.0
    %1230 = vmatprep.subr.mxu0 0.0
    %1231 = vmatpush1.msra.mxu0 0.0
    %1232 = vmatprep.subr.mxu0 0.0
    %1233 = vmatpush1.msra.mxu0 0.0
    %1234 = vmatprep.subr.mxu0 0.0
    %1235 = vmatpush1.msra.mxu0 0.0
    %1236 = vmatprep.subr.mxu0 0.0
    %1237 = vmatpush1.msra.mxu0 0.0
    %1238 = vmatprep.subr.mxu0 0.0
    %1239 = vmatpush1.msra.mxu0 0.0
    %1240 = vmatprep.subr.mxu0 0.0
    %1241 = vmatpush1.msra.mxu0 0.0
    %1242 = vmatprep.subr.mxu0 0.0
    %1243 = vmatpush1.msra.mxu0 0.0
    %1244 = vmatprep.subr.mxu0 0.0
    %1245 = vmatpush1.msra.mxu0 0.0
    %1246 = vmatprep.subr.mxu0 0.0
    %1247 = vmatpush1.msra.mxu0 0.0
    %1248 = vmatprep.subr.mxu0 0.0
    %1249 = vmatpush1.msra.mxu0 0.0
    %1250 = vmatprep.mubr.f32.mxu0 0.0
    %1251 = vmatmul.mubr.f32.gmra.mrb[0].mxu0 %v1184
    %v1252 = vpop.f32.mrb[0].mxu0
    %v1253 = vadd.f32 0.0, %v1252
    %v1254 = vpop.f32.mrb[0].mxu0
    %1255 = vdwg.mxu0
    %1256 = vrot.lane.b32.xlu0 %v166, 64
    %v1257 = vpop.permute.xlu0 %1256
    %v1260 = vsel %vm173, %v871, 0
    %1262 = vmatprep.subr.mxu0 0.0
    %1263 = vmatpush1.msra.mxu0 %v1257
    %1264 = vmatprep.subr.mxu0 0.0
    %1265 = vmatpush1.msra.mxu0 0.0
    %1266 = vmatprep.subr.mxu0 0.0
    %1267 = vmatpush1.msra.mxu0 0.0
    %1268 = vmatprep.subr.mxu0 0.0
    %1269 = vmatpush1.msra.mxu0 0.0
    %1270 = vmatprep.subr.mxu0 0.0
    %1271 = vmatpush1.msra.mxu0 0.0
    %1272 = vmatprep.subr.mxu0 0.0
    %1273 = vmatpush1.msra.mxu0 0.0
    %1274 = vmatprep.subr.mxu0 0.0
    %1275 = vmatpush1.msra.mxu0 0.0
    %1276 = vmatprep.subr.mxu0 0.0
    %1277 = vmatpush1.msra.mxu0 0.0
    %1278 = vmatprep.subr.mxu0 0.0
    %1279 = vmatpush1.msra.mxu0 0.0
    %1280 = vmatprep.subr.mxu0 0.0
    %1281 = vmatpush1.msra.mxu0 0.0
    %1282 = vmatprep.subr.mxu0 0.0
    %1283 = vmatpush1.msra.mxu0 0.0
    %1284 = vmatprep.subr.mxu0 0.0
    %1285 = vmatpush1.msra.mxu0 0.0
    %1286 = vmatprep.subr.mxu0 0.0
    %1287 = vmatpush1.msra.mxu0 0.0
    %1288 = vmatprep.subr.mxu0 0.0
    %1289 = vmatpush1.msra.mxu0 0.0
    %1290 = vmatprep.subr.mxu0 0.0
    %1291 = vmatpush1.msra.mxu0 0.0
    %1292 = vmatprep.subr.mxu0 0.0
    %1293 = vmatpush1.msra.mxu0 0.0
    %1294 = vmatprep.subr.mxu0 0.0
    %1295 = vmatpush1.msra.mxu0 0.0
    %1296 = vmatprep.subr.mxu0 0.0
    %1297 = vmatpush1.msra.mxu0 0.0
    %1298 = vmatprep.subr.mxu0 0.0
    %1299 = vmatpush1.msra.mxu0 0.0
    %1300 = vmatprep.subr.mxu0 0.0
    %1301 = vmatpush1.msra.mxu0 0.0
    %1302 = vmatprep.subr.mxu0 0.0
    %1303 = vmatpush1.msra.mxu0 0.0
    %1304 = vmatprep.subr.mxu0 0.0
    %1305 = vmatpush1.msra.mxu0 0.0
    %1306 = vmatprep.subr.mxu0 0.0
    %1307 = vmatpush1.msra.mxu0 0.0
    %1308 = vmatprep.subr.mxu0 0.0
    %1309 = vmatpush1.msra.mxu0 0.0
    %1310 = vmatprep.subr.mxu0 0.0
    %1311 = vmatpush1.msra.mxu0 0.0
    %1312 = vmatprep.subr.mxu0 0.0
    %1313 = vmatpush1.msra.mxu0 0.0
    %1314 = vmatprep.subr.mxu0 0.0
    %1315 = vmatpush1.msra.mxu0 0.0
    %1316 = vmatprep.subr.mxu0 0.0
    %1317 = vmatpush1.msra.mxu0 0.0
    %1318 = vmatprep.subr.mxu0 0.0
    %1319 = vmatpush1.msra.mxu0 0.0
    %1320 = vmatprep.subr.mxu0 0.0
    %1321 = vmatpush1.msra.mxu0 0.0
    %1322 = vmatprep.subr.mxu0 0.0
    %1323 = vmatpush1.msra.mxu0 0.0
    %1324 = vmatprep.subr.mxu0 0.0
    %1325 = vmatpush1.msra.mxu0 0.0
    %1326 = vmatprep.mubr.f32.mxu0 0.0
    %1327 = vmatmul.mubr.f32.gmra.mrb[0].mxu0 %v1260
    %v1328 = vpop.f32.mrb[0].mxu0
    %v1329 = vadd.f32 0.0, %v1328
    %v1330 = vpop.f32.mrb[0].mxu0
    %1331 = vdwg.mxu0
    %1332 = vrot.lane.b32.xlu0 %v168, 64
    %v1333 = vpop.permute.xlu0 %1332
    %v1336 = vsel %vm173, %v873, 0
    %1338 = vmatprep.subr.mxu0 0.0
    %1339 = vmatpush1.msra.mxu0 %v1333
    %1340 = vmatprep.subr.mxu0 0.0
    %1341 = vmatpush1.msra.mxu0 0.0
    %1342 = vmatprep.subr.mxu0 0.0
    %1343 = vmatpush1.msra.mxu0 0.0
    %1344 = vmatprep.subr.mxu0 0.0
    %1345 = vmatpush1.msra.mxu0 0.0
    %1346 = vmatprep.subr.mxu0 0.0
    %1347 = vmatpush1.msra.mxu0 0.0
    %1348 = vmatprep.subr.mxu0 0.0
    %1349 = vmatpush1.msra.mxu0 0.0
    %1350 = vmatprep.subr.mxu0 0.0
    %1351 = vmatpush1.msra.mxu0 0.0
    %1352 = vmatprep.subr.mxu0 0.0
    %1353 = vmatpush1.msra.mxu0 0.0
    %1354 = vmatprep.subr.mxu0 0.0
    %1355 = vmatpush1.msra.mxu0 0.0
    %1356 = vmatprep.subr.mxu0 0.0
    %1357 = vmatpush1.msra.mxu0 0.0
    %1358 = vmatprep.subr.mxu0 0.0
    %1359 = vmatpush1.msra.mxu0 0.0
    %1360 = vmatprep.subr.mxu0 0.0
    %1361 = vmatpush1.msra.mxu0 0.0
    %1362 = vmatprep.subr.mxu0 0.0
    %1363 = vmatpush1.msra.mxu0 0.0
    %1364 = vmatprep.subr.mxu0 0.0
    %1365 = vmatpush1.msra.mxu0 0.0
    %1366 = vmatprep.subr.mxu0 0.0
    %1367 = vmatpush1.msra.mxu0 0.0
    %1368 = vmatprep.subr.mxu0 0.0
    %1369 = vmatpush1.msra.mxu0 0.0
    %1370 = vmatprep.subr.mxu0 0.0
    %1371 = vmatpush1.msra.mxu0 0.0
    %1372 = vmatprep.subr.mxu0 0.0
    %1373 = vmatpush1.msra.mxu0 0.0
    %1374 = vmatprep.subr.mxu0 0.0
    %1375 = vmatpush1.msra.mxu0 0.0
    %1376 = vmatprep.subr.mxu0 0.0
    %1377 = vmatpush1.msra.mxu0 0.0
    %1378 = vmatprep.subr.mxu0 0.0
    %1379 = vmatpush1.msra.mxu0 0.0
    %1380 = vmatprep.subr.mxu0 0.0
    %1381 = vmatpush1.msra.mxu0 0.0
    %1382 = vmatprep.subr.mxu0 0.0
    %1383 = vmatpush1.msra.mxu0 0.0
    %1384 = vmatprep.subr.mxu0 0.0
    %1385 = vmatpush1.msra.mxu0 0.0
    %1386 = vmatprep.subr.mxu0 0.0
    %1387 = vmatpush1.msra.mxu0 0.0
    %1388 = vmatprep.subr.mxu0 0.0
    %1389 = vmatpush1.msra.mxu0 0.0
    %1390 = vmatprep.subr.mxu0 0.0
    %1391 = vmatpush1.msra.mxu0 0.0
    %1392 = vmatprep.subr.mxu0 0.0
    %1393 = vmatpush1.msra.mxu0 0.0
    %1394 = vmatprep.subr.mxu0 0.0
    %1395 = vmatpush1.msra.mxu0 0.0
    %1396 = vmatprep.subr.mxu0 0.0
    %1397 = vmatpush1.msra.mxu0 0.0
    %1398 = vmatprep.subr.mxu0 0.0
    %1399 = vmatpush1.msra.mxu0 0.0
    %1400 = vmatprep.subr.mxu0 0.0
    %1401 = vmatpush1.msra.mxu0 0.0
    %1402 = vmatprep.mubr.f32.mxu0 0.0
    %1403 = vmatmul.mubr.f32.gmra.mrb[0].mxu0 %v1336
    %v1404 = vpop.f32.mrb[0].mxu0
    %v1405 = vadd.f32 0.0, %v1404
    %v1406 = vpop.f32.mrb[0].mxu0
    %1407 = vdwg.mxu0
    %1408 = vrot.lane.b32.xlu0 %v170, 64
    %v1409 = vpop.permute.xlu0 %1408
    %v1412 = vsel %vm173, %v875, 0
    %1414 = vmatprep.subr.mxu0 0.0
    %1415 = vmatpush1.msra.mxu0 %v1409
    %1416 = vmatprep.subr.mxu0 0.0
    %1417 = vmatpush1.msra.mxu0 0.0
    %1418 = vmatprep.subr.mxu0 0.0
    %1419 = vmatpush1.msra.mxu0 0.0
    %1420 = vmatprep.subr.mxu0 0.0
    %1421 = vmatpush1.msra.mxu0 0.0
    %1422 = vmatprep.subr.mxu0 0.0
    %1423 = vmatpush1.msra.mxu0 0.0
    %1424 = vmatprep.subr.mxu0 0.0
    %1425 = vmatpush1.msra.mxu0 0.0
    %1426 = vmatprep.subr.mxu0 0.0
    %1427 = vmatpush1.msra.mxu0 0.0
    %1428 = vmatprep.subr.mxu0 0.0
    %1429 = vmatpush1.msra.mxu0 0.0
    %1430 = vmatprep.subr.mxu0 0.0
    %1431 = vmatpush1.msra.mxu0 0.0
    %1432 = vmatprep.subr.mxu0 0.0
    %1433 = vmatpush1.msra.mxu0 0.0
    %1434 = vmatprep.subr.mxu0 0.0
    %1435 = vmatpush1.msra.mxu0 0.0
    %1436 = vmatprep.subr.mxu0 0.0
    %1437 = vmatpush1.msra.mxu0 0.0
    %1438 = vmatprep.subr.mxu0 0.0
    %1439 = vmatpush1.msra.mxu0 0.0
    %1440 = vmatprep.subr.mxu0 0.0
    %1441 = vmatpush1.msra.mxu0 0.0
    %1442 = vmatprep.subr.mxu0 0.0
    %1443 = vmatpush1.msra.mxu0 0.0
    %1444 = vmatprep.subr.mxu0 0.0
    %1445 = vmatpush1.msra.mxu0 0.0
    %1446 = vmatprep.subr.mxu0 0.0
    %1447 = vmatpush1.msra.mxu0 0.0
    %1448 = vmatprep.subr.mxu0 0.0
    %1449 = vmatpush1.msra.mxu0 0.0
    %1450 = vmatprep.subr.mxu0 0.0
    %1451 = vmatpush1.msra.mxu0 0.0
    %1452 = vmatprep.subr.mxu0 0.0
    %1453 = vmatpush1.msra.mxu0 0.0
    %1454 = vmatprep.subr.mxu0 0.0
    %1455 = vmatpush1.msra.mxu0 0.0
    %1456 = vmatprep.subr.mxu0 0.0
    %1457 = vmatpush1.msra.mxu0 0.0
    %1458 = vmatprep.subr.mxu0 0.0
    %1459 = vmatpush1.msra.mxu0 0.0
    %1460 = vmatprep.subr.mxu0 0.0
    %1461 = vmatpush1.msra.mxu0 0.0
    %1462 = vmatprep.subr.mxu0 0.0
    %1463 = vmatpush1.msra.mxu0 0.0
    %1464 = vmatprep.subr.mxu0 0.0
    %1465 = vmatpush1.msra.mxu0 0.0
    %1466 = vmatprep.subr.mxu0 0.0
    %1467 = vmatpush1.msra.mxu0 0.0
    %1468 = vmatprep.subr.mxu0 0.0
    %1469 = vmatpush1.msra.mxu0 0.0
    %1470 = vmatprep.subr.mxu0 0.0
    %1471 = vmatpush1.msra.mxu0 0.0
    %1472 = vmatprep.subr.mxu0 0.0
    %1473 = vmatpush1.msra.mxu0 0.0
    %1474 = vmatprep.subr.mxu0 0.0
    %1475 = vmatpush1.msra.mxu0 0.0
    %1476 = vmatprep.subr.mxu0 0.0
    %1477 = vmatpush1.msra.mxu0 0.0
    %1478 = vmatprep.mubr.f32.mxu0 0.0
    %1479 = vmatmul.mubr.f32.gmra.mrb[0].mxu0 %v1412
    %v1480 = vpop.f32.mrb[0].mxu0
    %v1481 = vadd.f32 0.0, %v1480
    %v1482 = vpop.f32.mrb[0].mxu0
    %1483 = vdwg.mxu0
    %v1484 = vld [vmem:[#allocation7] sm:$0xff]
    %v1485 = vld [vmem:[#allocation7 + $0x8] sm:$0xff]
    %v1486 = vld [vmem:[#allocation7 + $0x10] sm:$0xff]
    %v1487 = vld [vmem:[#allocation7 + $0x18] sm:$0xff]
    %v1489 = vsel %vm173, %v949, 0
    %v1492 = vsel %vm173, %v1025, 0
    %1494 = vmatprep.subr.mxu0 0.0
    %1495 = vmatpush1.msra.mxu0 %v1484
    %1496 = vmatprep.subr.mxu0 0.0
    %1497 = vmatpush1.msra.mxu0 0.0
    %1498 = vmatprep.subr.mxu0 0.0
    %1499 = vmatpush1.msra.mxu0 0.0
    %1500 = vmatprep.subr.mxu0 0.0
    %1501 = vmatpush1.msra.mxu0 0.0
    %1502 = vmatprep.subr.mxu0 0.0
    %1503 = vmatpush1.msra.mxu0 0.0
    %1504 = vmatprep.subr.mxu0 0.0
    %1505 = vmatpush1.msra.mxu0 0.0
    %1506 = vmatprep.subr.mxu0 0.0
    %1507 = vmatpush1.msra.mxu0 0.0
    %1508 = vmatprep.subr.mxu0 0.0
    %1509 = vmatpush1.msra.mxu0 0.0
    %1510 = vmatprep.subr.mxu0 0.0
    %1511 = vmatpush1.msra.mxu0 0.0
    %1512 = vmatprep.subr.mxu0 0.0
    %1513 = vmatpush1.msra.mxu0 0.0
    %1514 = vmatprep.subr.mxu0 0.0
    %1515 = vmatpush1.msra.mxu0 0.0
    %1516 = vmatprep.subr.mxu0 0.0
    %1517 = vmatpush1.msra.mxu0 0.0
    %1518 = vmatprep.subr.mxu0 0.0
    %1519 = vmatpush1.msra.mxu0 0.0
    %1520 = vmatprep.subr.mxu0 0.0
    %1521 = vmatpush1.msra.mxu0 0.0
    %1522 = vmatprep.subr.mxu0 0.0
    %1523 = vmatpush1.msra.mxu0 0.0
    %1524 = vmatprep.subr.mxu0 0.0
    %1525 = vmatpush1.msra.mxu0 0.0
    %1526 = vmatprep.subr.mxu0 0.0
    %1527 = vmatpush1.msra.mxu0 0.0
    %1528 = vmatprep.subr.mxu0 0.0
    %1529 = vmatpush1.msra.mxu0 0.0
    %1530 = vmatprep.subr.mxu0 0.0
    %1531 = vmatpush1.msra.mxu0 0.0
    %1532 = vmatprep.subr.mxu0 0.0
    %1533 = vmatpush1.msra.mxu0 0.0
    %1534 = vmatprep.subr.mxu0 0.0
    %1535 = vmatpush1.msra.mxu0 0.0
    %1536 = vmatprep.subr.mxu0 0.0
    %1537 = vmatpush1.msra.mxu0 0.0
    %1538 = vmatprep.subr.mxu0 0.0
    %1539 = vmatpush1.msra.mxu0 0.0
    %1540 = vmatprep.subr.mxu0 0.0
    %1541 = vmatpush1.msra.mxu0 0.0
    %1542 = vmatprep.subr.mxu0 0.0
    %1543 = vmatpush1.msra.mxu0 0.0
    %1544 = vmatprep.subr.mxu0 0.0
    %1545 = vmatpush1.msra.mxu0 0.0
    %1546 = vmatprep.subr.mxu0 0.0
    %1547 = vmatpush1.msra.mxu0 0.0
    %1548 = vmatprep.subr.mxu0 0.0
    %1549 = vmatpush1.msra.mxu0 0.0
    %1550 = vmatprep.subr.mxu0 0.0
    %1551 = vmatpush1.msra.mxu0 0.0
    %1552 = vmatprep.subr.mxu0 0.0
    %1553 = vmatpush1.msra.mxu0 0.0
    %1554 = vmatprep.subr.mxu0 0.0
    %1555 = vmatpush1.msra.mxu0 0.0
    %1556 = vmatprep.subr.mxu0 0.0
    %1557 = vmatpush1.msra.mxu0 0.0
    %1558 = vmatprep.mubr.f32.mxu0 0.0
    %1559 = vmatmul.mubr.f32.gmra.mrb[0].mxu0 %v1489
    %v1560 = vpop.f32.mrb[0].mxu0
    %v1561 = vadd.f32 0.0, %v1560
    %v1562 = vpop.f32.mrb[0].mxu0
    %1563 = vmatprep.mubr.f32.mxu0 0.0
    %1564 = vmatmul.mubr.f32.gmra.mrb[0].mxu0 %v1492
    %v1565 = vpop.f32.mrb[0].mxu0
    %v1566 = vadd.f32 0.0, %v1565
    %v1567 = vpop.f32.mrb[0].mxu0
    %1568 = vdwg.mxu0
    %v1570 = vsel %vm173, %v1101, 0
    %v1573 = vsel %vm173, %v1177, 0
    %1575 = vmatprep.subr.mxu0 0.0
    %1576 = vmatpush1.msra.mxu0 %v1485
    %1577 = vmatprep.subr.mxu0 0.0
    %1578 = vmatpush1.msra.mxu0 0.0
    %1579 = vmatprep.subr.mxu0 0.0
    %1580 = vmatpush1.msra.mxu0 0.0
    %1581 = vmatprep.subr.mxu0 0.0
    %1582 = vmatpush1.msra.mxu0 0.0
    %1583 = vmatprep.subr.mxu0 0.0
    %1584 = vmatpush1.msra.mxu0 0.0
    %1585 = vmatprep.subr.mxu0 0.0
    %1586 = vmatpush1.msra.mxu0 0.0
    %1587 = vmatprep.subr.mxu0 0.0
    %1588 = vmatpush1.msra.mxu0 0.0
    %1589 = vmatprep.subr.mxu0 0.0
    %1590 = vmatpush1.msra.mxu0 0.0
    %1591 = vmatprep.subr.mxu0 0.0
    %1592 = vmatpush1.msra.mxu0 0.0
    %1593 = vmatprep.subr.mxu0 0.0
    %1594 = vmatpush1.msra.mxu0 0.0
    %1595 = vmatprep.subr.mxu0 0.0
    %1596 = vmatpush1.msra.mxu0 0.0
    %1597 = vmatprep.subr.mxu0 0.0
    %1598 = vmatpush1.msra.mxu0 0.0
    %1599 = vmatprep.subr.mxu0 0.0
    %1600 = vmatpush1.msra.mxu0 0.0
    %1601 = vmatprep.subr.mxu0 0.0
    %1602 = vmatpush1.msra.mxu0 0.0
    %1603 = vmatprep.subr.mxu0 0.0
    %1604 = vmatpush1.msra.mxu0 0.0
    %1605 = vmatprep.subr.mxu0 0.0
    %1606 = vmatpush1.msra.mxu0 0.0
    %1607 = vmatprep.subr.mxu0 0.0
    %1608 = vmatpush1.msra.mxu0 0.0
    %1609 = vmatprep.subr.mxu0 0.0
    %1610 = vmatpush1.msra.mxu0 0.0
    %1611 = vmatprep.subr.mxu0 0.0
    %1612 = vmatpush1.msra.mxu0 0.0
    %1613 = vmatprep.subr.mxu0 0.0
    %1614 = vmatpush1.msra.mxu0 0.0
    %1615 = vmatprep.subr.mxu0 0.0
    %1616 = vmatpush1.msra.mxu0 0.0
    %1617 = vmatprep.subr.mxu0 0.0
    %1618 = vmatpush1.msra.mxu0 0.0
    %1619 = vmatprep.subr.mxu0 0.0
    %1620 = vmatpush1.msra.mxu0 0.0
    %1621 = vmatprep.subr.mxu0 0.0
    %1622 = vmatpush1.msra.mxu0 0.0
    %1623 = vmatprep.subr.mxu0 0.0
    %1624 = vmatpush1.msra.mxu0 0.0
    %1625 = vmatprep.subr.mxu0 0.0
    %1626 = vmatpush1.msra.mxu0 0.0
    %1627 = vmatprep.subr.mxu0 0.0
    %1628 = vmatpush1.msra.mxu0 0.0
    %1629 = vmatprep.subr.mxu0 0.0
    %1630 = vmatpush1.msra.mxu0 0.0
    %1631 = vmatprep.subr.mxu0 0.0
    %1632 = vmatpush1.msra.mxu0 0.0
    %1633 = vmatprep.subr.mxu0 0.0
    %1634 = vmatpush1.msra.mxu0 0.0
    %1635 = vmatprep.subr.mxu0 0.0
    %1636 = vmatpush1.msra.mxu0 0.0
    %1637 = vmatprep.subr.mxu0 0.0
    %1638 = vmatpush1.msra.mxu0 0.0
    %1639 = vmatprep.mubr.f32.mxu0 0.0
    %1640 = vmatmul.mubr.f32.gmra.mrb[0].mxu0 %v1570
    %v1641 = vpop.f32.mrb[0].mxu0
    %v1642 = vadd.f32 0.0, %v1641
    %v1643 = vpop.f32.mrb[0].mxu0
    %1644 = vmatprep.mubr.f32.mxu0 0.0
    %1645 = vmatmul.mubr.f32.gmra.mrb[0].mxu0 %v1573
    %v1646 = vpop.f32.mrb[0].mxu0
    %v1647 = vadd.f32 0.0, %v1646
    %v1648 = vpop.f32.mrb[0].mxu0
    %1649 = vdwg.mxu0
    %v1651 = vsel %vm173, %v1253, 0
    %v1654 = vsel %vm173, %v1329, 0
    %1656 = vmatprep.subr.mxu0 0.0
    %1657 = vmatpush1.msra.mxu0 %v1486
    %1658 = vmatprep.subr.mxu0 0.0
    %1659 = vmatpush1.msra.mxu0 0.0
    %1660 = vmatprep.subr.mxu0 0.0
    %1661 = vmatpush1.msra.mxu0 0.0
    %1662 = vmatprep.subr.mxu0 0.0
    %1663 = vmatpush1.msra.mxu0 0.0
    %1664 = vmatprep.subr.mxu0 0.0
    %1665 = vmatpush1.msra.mxu0 0.0
    %1666 = vmatprep.subr.mxu0 0.0
    %1667 = vmatpush1.msra.mxu0 0.0
    %1668 = vmatprep.subr.mxu0 0.0
    %1669 = vmatpush1.msra.mxu0 0.0
    %1670 = vmatprep.subr.mxu0 0.0
    %1671 = vmatpush1.msra.mxu0 0.0
    %1672 = vmatprep.subr.mxu0 0.0
    %1673 = vmatpush1.msra.mxu0 0.0
    %1674 = vmatprep.subr.mxu0 0.0
    %1675 = vmatpush1.msra.mxu0 0.0
    %1676 = vmatprep.subr.mxu0 0.0
    %1677 = vmatpush1.msra.mxu0 0.0
    %1678 = vmatprep.subr.mxu0 0.0
    %1679 = vmatpush1.msra.mxu0 0.0
    %1680 = vmatprep.subr.mxu0 0.0
    %1681 = vmatpush1.msra.mxu0 0.0
    %1682 = vmatprep.subr.mxu0 0.0
    %1683 = vmatpush1.msra.mxu0 0.0
    %1684 = vmatprep.subr.mxu0 0.0
    %1685 = vmatpush1.msra.mxu0 0.0
    %1686 = vmatprep.subr.mxu0 0.0
    %1687 = vmatpush1.msra.mxu0 0.0
    %1688 = vmatprep.subr.mxu0 0.0
    %1689 = vmatpush1.msra.mxu0 0.0
    %1690 = vmatprep.subr.mxu0 0.0
    %1691 = vmatpush1.msra.mxu0 0.0
    %1692 = vmatprep.subr.mxu0 0.0
    %1693 = vmatpush1.msra.mxu0 0.0
    %1694 = vmatprep.subr.mxu0 0.0
    %1695 = vmatpush1.msra.mxu0 0.0
    %1696 = vmatprep.subr.mxu0 0.0
    %1697 = vmatpush1.msra.mxu0 0.0
    %1698 = vmatprep.subr.mxu0 0.0
    %1699 = vmatpush1.msra.mxu0 0.0
    %1700 = vmatprep.subr.mxu0 0.0
    %1701 = vmatpush1.msra.mxu0 0.0
    %1702 = vmatprep.subr.mxu0 0.0
    %1703 = vmatpush1.msra.mxu0 0.0
    %1704 = vmatprep.subr.mxu0 0.0
    %1705 = vmatpush1.msra.mxu0 0.0
    %1706 = vmatprep.subr.mxu0 0.0
    %1707 = vmatpush1.msra.mxu0 0.0
    %1708 = vmatprep.subr.mxu0 0.0
    %1709 = vmatpush1.msra.mxu0 0.0
    %1710 = vmatprep.subr.mxu0 0.0
    %1711 = vmatpush1.msra.mxu0 0.0
    %1712 = vmatprep.subr.mxu0 0.0
    %1713 = vmatpush1.msra.mxu0 0.0
    %1714 = vmatprep.subr.mxu0 0.0
    %1715 = vmatpush1.msra.mxu0 0.0
    %1716 = vmatprep.subr.mxu0 0.0
    %1717 = vmatpush1.msra.mxu0 0.0
    %1718 = vmatprep.subr.mxu0 0.0
    %1719 = vmatpush1.msra.mxu0 0.0
    %1720 = vmatprep.mubr.f32.mxu0 0.0
    %1721 = vmatmul.mubr.f32.gmra.mrb[0].mxu0 %v1651
    %v1722 = vpop.f32.mrb[0].mxu0
    %v1723 = vadd.f32 0.0, %v1722
    %v1724 = vpop.f32.mrb[0].mxu0
    %1725 = vmatprep.mubr.f32.mxu0 0.0
    %1726 = vmatmul.mubr.f32.gmra.mrb[0].mxu0 %v1654
    %v1727 = vpop.f32.mrb[0].mxu0
    %v1728 = vadd.f32 0.0, %v1727
    %v1729 = vpop.f32.mrb[0].mxu0
    %1730 = vdwg.mxu0
    %v1732 = vsel %vm173, %v1405, 0
    %v1735 = vsel %vm173, %v1481, 0
    %1737 = vmatprep.subr.mxu0 0.0
    %1738 = vmatpush1.msra.mxu0 %v1487
    %1739 = vmatprep.subr.mxu0 0.0
    %1740 = vmatpush1.msra.mxu0 0.0
    %1741 = vmatprep.subr.mxu0 0.0
    %1742 = vmatpush1.msra.mxu0 0.0
    %1743 = vmatprep.subr.mxu0 0.0
    %1744 = vmatpush1.msra.mxu0 0.0
    %1745 = vmatprep.subr.mxu0 0.0
    %1746 = vmatpush1.msra.mxu0 0.0
    %1747 = vmatprep.subr.mxu0 0.0
    %1748 = vmatpush1.msra.mxu0 0.0
    %1749 = vmatprep.subr.mxu0 0.0
    %1750 = vmatpush1.msra.mxu0 0.0
    %1751 = vmatprep.subr.mxu0 0.0
    %1752 = vmatpush1.msra.mxu0 0.0
    %1753 = vmatprep.subr.mxu0 0.0
    %1754 = vmatpush1.msra.mxu0 0.0
    %1755 = vmatprep.subr.mxu0 0.0
    %1756 = vmatpush1.msra.mxu0 0.0
    %1757 = vmatprep.subr.mxu0 0.0
    %1758 = vmatpush1.msra.mxu0 0.0
    %1759 = vmatprep.subr.mxu0 0.0
    %1760 = vmatpush1.msra.mxu0 0.0
    %1761 = vmatprep.subr.mxu0 0.0
    %1762 = vmatpush1.msra.mxu0 0.0
    %1763 = vmatprep.subr.mxu0 0.0
    %1764 = vmatpush1.msra.mxu0 0.0
    %1765 = vmatprep.subr.mxu0 0.0
    %1766 = vmatpush1.msra.mxu0 0.0
    %1767 = vmatprep.subr.mxu0 0.0
    %1768 = vmatpush1.msra.mxu0 0.0
    %1769 = vmatprep.subr.mxu0 0.0
    %1770 = vmatpush1.msra.mxu0 0.0
    %1771 = vmatprep.subr.mxu0 0.0
    %1772 = vmatpush1.msra.mxu0 0.0
    %1773 = vmatprep.subr.mxu0 0.0
    %1774 = vmatpush1.msra.mxu0 0.0
    %1775 = vmatprep.subr.mxu0 0.0
    %1776 = vmatpush1.msra.mxu0 0.0
    %1777 = vmatprep.subr.mxu0 0.0
    %1778 = vmatpush1.msra.mxu0 0.0
    %1779 = vmatprep.subr.mxu0 0.0
    %1780 = vmatpush1.msra.mxu0 0.0
    %1781 = vmatprep.subr.mxu0 0.0
    %1782 = vmatpush1.msra.mxu0 0.0
    %1783 = vmatprep.subr.mxu0 0.0
    %1784 = vmatpush1.msra.mxu0 0.0
    %1785 = vmatprep.subr.mxu0 0.0
    %1786 = vmatpush1.msra.mxu0 0.0
    %1787 = vmatprep.subr.mxu0 0.0
    %1788 = vmatpush1.msra.mxu0 0.0
    %1789 = vmatprep.subr.mxu0 0.0
    %1790 = vmatpush1.msra.mxu0 0.0
    %1791 = vmatprep.subr.mxu0 0.0
    %1792 = vmatpush1.msra.mxu0 0.0
    %1793 = vmatprep.subr.mxu0 0.0
    %1794 = vmatpush1.msra.mxu0 0.0
    %1795 = vmatprep.subr.mxu0 0.0
    %1796 = vmatpush1.msra.mxu0 0.0
    %1797 = vmatprep.subr.mxu0 0.0
    %1798 = vmatpush1.msra.mxu0 0.0
    %1799 = vmatprep.subr.mxu0 0.0
    %1800 = vmatpush1.msra.mxu0 0.0
    %1801 = vmatprep.mubr.f32.mxu0 0.0
    %1802 = vmatmul.mubr.f32.gmra.mrb[0].mxu0 %v1732
    %v1803 = vpop.f32.mrb[0].mxu0
    %v1804 = vadd.f32 0.0, %v1803
    %v1805 = vpop.f32.mrb[0].mxu0
    %1806 = vmatprep.mubr.f32.mxu0 0.0
    %1807 = vmatmul.mubr.f32.gmra.mrb[0].mxu0 %v1735
    %v1808 = vpop.f32.mrb[0].mxu0
    %v1809 = vadd.f32 0.0, %v1808
    %v1810 = vpop.f32.mrb[0].mxu0
    %1811 = vdwg.mxu0
    %v1812 = vsel %vm75, %v1561, 0.0
    %v1813 = vsel %vm75, %v1642, 0.0
    %v1814 = vadd.f32 %v1812, %v1813
    %v1815 = vsel %vm75, %v1723, 0.0
    %v1816 = vadd.f32 %v1814, %v1815
    %v1817 = vsel %vm75, %v1804, 0.0
    %v1818 = vadd.f32 %v1816, %v1817
    %v1819 = vsel %vm75, %v1566, 0.0
    %v1820 = vsel %vm75, %v1647, 0.0
    %v1821 = vadd.f32 %v1819, %v1820
    %v1822 = vsel %vm75, %v1728, 0.0
    %v1823 = vadd.f32 %v1821, %v1822
    %v1824 = vsel %vm75, %v1809, 0.0
    %v1825 = vadd.f32 %v1823, %v1824
    %v1826 = vld [vmem:[%s4] sm:$0x1]
    %v1828 = vlaneseq
    %v1829 = vshrl.u32 %v1828, 7
    %v1830 = vsub.s32 0, %v1829
    %v1831 = vrot.slane %v1826, %v1830
    %v1833 = vadd.f32 %v1818, %v1831
    %v1834 = vadd.f32 %v1825, %v1831
    %1835 = vst.msk [vmem:[#allocation8] sm:$0xff] %vm75, %v1833
    %1836 = vst.msk [vmem:[#allocation8 + $0x8] sm:$0xff] %vm75, %v1834
    // Predicated region
    $region34: #{attention_heads_forward.1} parent=1 // pred_check
      _
    $region35: #{attention_heads_forward.1} parent=1 // pred_check_branch
      %1838 = sbr.rel (0) target = $region37
    $region36: #{attention_heads_forward.1} parent=1 // pred_region
      %s1840 = ssub.s32 256, 256
      %1841 = vsyncadd [#allocation4], %s1840
      %s1842 = sshll.u32 [#allocation8], 4
      %s1843 = int_to_ptr.vmem [resolvable:$true] %s1842
      %1848 = dma.vmem_to_hbm [thread:$0]  %s1843, 256, %s5, [#allocation4], 128, 128, 8
    $region37: #{attention_heads_forward.1} parent=1 // pred_fallthru
      _
    // Predicated region
    $region38: #{attention_heads_forward.1} parent=1 // pred_check
      _
    $region39: #{attention_heads_forward.1} parent=1 // pred_check_branch
      %1850 = sbr.rel (0) target = $region41
    $region40: #{attention_heads_forward.1} parent=1 // pred_region
      %1851 = dma.done [#allocation4], 256
    $region41: #{attention_heads_forward.1} parent=1 // pred_fallthru
      _
    %1852 = vsyncpa [#allocation3], 1
    %1853 = vsyncpa [#allocation6], 1
    %1854 = vsyncpa [#allocation4], 1

</llo_original>
